<compile_context>
chip_gen: v5e
topology: v5e:2x2
jax: 0.10.0
libtpu: 0.0.40
codegen_flags: <defaults>
</compile_context>

<pallas_src>
import jax
import jax.numpy as jnp
from jax.experimental import pallas as pl
from jax.experimental.pallas import tpu as pltpu

HIDDEN1 = 1024
HIDDEN2 = 256
LANE = 128


def _round_up(v, m):
    return (v + m - 1) // m * m


def _mlp_kernel(x_ref, w1_ref, b1_ref, w2_ref, b2_ref, w3_ref, b3_ref, o_ref):
    # layer 1: bf16 x bf16 MXU matmul, f32 accumulate; f32 bias + ReLU on VPU.
    h1 = jnp.dot(x_ref[...], w1_ref[...], preferred_element_type=jnp.float32)
    h1 = jnp.maximum(h1 + b1_ref[...], 0.0)
    # layer 2
    h2 = jnp.dot(h1.astype(w2_ref.dtype), w2_ref[...],
                 preferred_element_type=jnp.float32)
    h2 = jnp.maximum(h2 + b2_ref[...], 0.0)
    # layer 3 (no activation); out feature dim is lane-padded to 128, so this
    # store is lane-dense (no masked vst.msk).
    out = jnp.dot(h2.astype(w3_ref.dtype), w3_ref[...],
                  preferred_element_type=jnp.float32)
    o_ref[...] = (out + b3_ref[...]).astype(o_ref.dtype)


def base_nn_forward(x, params, *, tile_b=None, compute_dtype=jnp.bfloat16):
    """Fused forward pass of BaseNN.

    x: (B, input_dim) float32
    params: dict with w1 (in,1024), b1 (1,1024), w2 (1024,256), b2 (1,256),
            w3 (256,out), b3 (1,out).  Weights may be f32 or bf16.
    """
    B, in_dim = x.shape
    out_dim = params["w3"].shape[1]

    # Batch tile: 256 rows fills the 256-wide MXU on v6e/v7x (pass tile_b=128
    # on v5e).  Small batches are just rounded up to a sublane multiple.
    if tile_b is None:
        tile_b = 256 if B >= 256 else _round_up(B, 8)
    tile_b = max(8, min(tile_b, _round_up(B, 8)))
    B_pad = _round_up(B, tile_b)
    out_pad = _round_up(out_dim, LANE)
    itemsize = jnp.dtype(compute_dtype).itemsize

    xp = x.astype(compute_dtype)
    if B_pad != B:
        xp = jnp.pad(xp, ((0, B_pad - B), (0, 0)))

    w1 = params["w1"].astype(compute_dtype)
    w2 = params["w2"].astype(compute_dtype)
    w3 = params["w3"].astype(compute_dtype)
    b1 = params["b1"].astype(jnp.float32).reshape(1, HIDDEN1)
    b2 = params["b2"].astype(jnp.float32).reshape(1, HIDDEN2)
    b3 = params["b3"].astype(jnp.float32).reshape(1, out_dim)
    if out_pad != out_dim:  # lane-dense output slab; extra columns are zero
        w3 = jnp.pad(w3, ((0, 0), (0, out_pad - out_dim)))
        b3 = jnp.pad(b3, ((0, 0), (0, out_pad - out_dim)))

    grid = (B_pad // tile_b,)

    # Advisory cost estimate for the XLA scheduler.
    flops = 2 * B_pad * (in_dim * HIDDEN1 + HIDDEN1 * HIDDEN2 + HIDDEN2 * out_pad)
    bytes_accessed = (
        xp.size * itemsize
        + (w1.size + w2.size + w3.size) * itemsize
        + (b1.size + b2.size + b3.size) * 4
        + B_pad * out_pad * 4
    )
    cost = pl.CostEstimate(flops=flops, transcendentals=0,
                           bytes_accessed=int(bytes_accessed))

    # VMEM budget: weights single-buffered + double-buffered x/out tiles +
    # f32 intermediates, with 25% headroom (capped well under physical VMEM).
    # NOTE: for very large in_dim (>~4K) layer 1 should be K-tiled with a VMEM
    # accumulator instead of keeping the whole w1 block resident.
    weight_vmem = (in_dim * HIDDEN1 + HIDDEN1 * HIDDEN2 + HIDDEN2 * out_pad) * itemsize
    act_vmem = (2 * tile_b * max(in_dim, LANE) * itemsize   # x tile (double-buffered)
                + 2 * tile_b * out_pad * 4                  # out tile (double-buffered)
                + 2 * tile_b * (HIDDEN1 + HIDDEN2) * 4      # h1/h2 intermediates
                + 3 * 8 * HIDDEN1 * 4)                      # sublane-padded bias tiles
    vmem_limit = int(min(max((weight_vmem + act_vmem) * 5 // 4, 32 << 20), 100 << 20))

    def _run(single_buffer_weights):
        if single_buffer_weights:
            # Grid-invariant blocks: one VMEM buffer is enough (index map is
            # constant), halving weight VMEM residency.
            const = lambda shape: pl.BlockSpec(
                shape, lambda i: (0, 0), pipeline_mode=pl.Buffered(1))
        else:
            const = lambda shape: pl.BlockSpec(shape, lambda i: (0, 0))

        call = pl.pallas_call(
            _mlp_kernel,
            out_shape=jax.ShapeDtypeStruct((B_pad, out_pad), x.dtype),
            grid_spec=pltpu.PrefetchScalarGridSpec(
                num_scalar_prefetch=0,
                grid=grid,
                in_specs=[
                    pl.BlockSpec((tile_b, in_dim), lambda i: (i, 0)),  # x tile
                    const((in_dim, HIDDEN1)),                          # w1
                    const((1, HIDDEN1)),                               # b1
                    const((HIDDEN1, HIDDEN2)),                         # w2
                    const((1, HIDDEN2)),                               # b2
                    const((HIDDEN2, out_pad)),                         # w3 (padded)
                    const((1, out_pad)),                               # b3 (padded)
                ],
                out_specs=pl.BlockSpec((tile_b, out_pad), lambda i: (i, 0)),
            ),
            compiler_params=pltpu.CompilerParams(
                dimension_semantics=("parallel",),   # batch axis -> megacore on v7x
                vmem_limit_bytes=vmem_limit,
            ),
            cost_estimate=cost,
        )
        return call(xp, w1, b1, w2, b2, w3, b3)

    try:
        out = _run(True)
    except Exception:
        # Fall back to default double-buffering if Buffered(1) is unsupported.
        out = _run(False)

    return out[:B, :out_dim]


def init_params(key, input_dim, output_dim, weight_dtype=jnp.bfloat16):
    """Deterministic synthetic init (PyTorch-style uniform bounds).

    Weights are cast to bf16 once here (native MXU path); biases stay f32.
    """
    ks = jax.random.split(key, 6)

    def linear_init(kw, kb, fan_in, fan_out):
        bound = 1.0 / jnp.sqrt(fan_in)
        w = jax.random.uniform(kw, (fan_in, fan_out), jnp.float32, -bound, bound)
        b = jax.random.uniform(kb, (1, fan_out), jnp.float32, -bound, bound)
        return w.astype(weight_dtype), b

    w1, b1 = linear_init(ks[0], ks[1], input_dim, HIDDEN1)
    w2, b2 = linear_init(ks[2], ks[3], HIDDEN1, HIDDEN2)
    w3, b3 = linear_init(ks[4], ks[5], HIDDEN2, output_dim)
    return {"w1": w1, "b1": b1, "w2": w2, "b2": b2, "w3": w3, "b3": b3}


if __name__ == "__main__":
    key = jax.random.PRNGKey(0)
    k_x, k_p = jax.random.split(key)

    batch = 8
    input_dim = 32
    output_dim = 16

    x = jax.random.normal(k_x, (batch, input_dim), dtype=jnp.float32)
    params = init_params(k_p, input_dim, output_dim)

    out = jax.block_until_ready(base_nn_forward(x, params))
    assert out.shape == (batch, output_dim)
    assert out.dtype == jnp.float32

    # Reference: same math in plain JAX (bf16 matmul inputs, f32 accumulate).
    cd = jnp.bfloat16
    h1 = jnp.maximum(
        jnp.dot(x.astype(cd), params["w1"].astype(cd),
                preferred_element_type=jnp.float32) + params["b1"], 0.0)
    h2 = jnp.maximum(
        jnp.dot(h1.astype(cd), params["w2"].astype(cd),
                preferred_element_type=jnp.float32) + params["b2"], 0.0)
    ref = jnp.dot(h2.astype(cd), params["w3"].astype(cd),
                  preferred_element_type=jnp.float32) + params["b3"]

    assert jnp.allclose(out, ref, atol=1e-2, rtol=1e-2), float(
        jnp.max(jnp.abs(out - ref)))

    print("KERNEL_OK")
</pallas_src>

<mosaic_0001>
module attributes {stable_mosaic.version = 11 : i64} {
  func.func @_mlp_kernel(%arg0: i32, %arg1: memref<8x32xbf16, #tpu.memory_space<vmem>>, %arg2: memref<32x1024xbf16, #tpu.memory_space<vmem>>, %arg3: memref<1x1024xf32, #tpu.memory_space<vmem>>, %arg4: memref<1024x256xbf16, #tpu.memory_space<vmem>>, %arg5: memref<1x256xf32, #tpu.memory_space<vmem>>, %arg6: memref<256x128xbf16, #tpu.memory_space<vmem>>, %arg7: memref<1x128xf32, #tpu.memory_space<vmem>>, %arg8: memref<8x128xf32, #tpu.memory_space<vmem>>) attributes {dimension_semantics = [#tpu.dimension_semantics<parallel>], iteration_bounds = array<i64: 1>, scalar_prefetch = 0 : i64, scratch_operands = 0 : i64, tpu.core_type = #tpu.core_type<tc>, window_params = [{transform_indices = @transform_0, window_bounds = array<i64: 8, 32>}, {pipeline_mode = #tpu.pipeline_mode<synchronous>, transform_indices = @transform_1, window_bounds = array<i64: 32, 1024>}, {pipeline_mode = #tpu.pipeline_mode<synchronous>, transform_indices = @transform_2, window_bounds = array<i64: 1, 1024>}, {pipeline_mode = #tpu.pipeline_mode<synchronous>, transform_indices = @transform_3, window_bounds = array<i64: 1024, 256>}, {pipeline_mode = #tpu.pipeline_mode<synchronous>, transform_indices = @transform_4, window_bounds = array<i64: 1, 256>}, {pipeline_mode = #tpu.pipeline_mode<synchronous>, transform_indices = @transform_5, window_bounds = array<i64: 256, 128>}, {pipeline_mode = #tpu.pipeline_mode<synchronous>, transform_indices = @transform_6, window_bounds = array<i64: 1, 128>}, {transform_indices = @transform_7, window_bounds = array<i64: 8, 128>}]} {
    %c0 = arith.constant 0 : index
    %c0_0 = arith.constant 0 : index
    %0 = vector.load %arg1[%c0, %c0_0] : memref<8x32xbf16, #tpu.memory_space<vmem>>, vector<8x32xbf16>
    %c0_1 = arith.constant 0 : index
    %c0_2 = arith.constant 0 : index
    %1 = vector.load %arg2[%c0_1, %c0_2] : memref<32x1024xbf16, #tpu.memory_space<vmem>>, vector<32x1024xbf16>
    %cst = arith.constant dense<0.000000e+00> : vector<8x1024xf32>
    %2 = tpu.matmul %0, %1, %cst {dimension_numbers = #tpu.dot_dimension_numbers<[1], [0], [0], [1], [0, 0, 1, 1], [], []>} : vector<8x32xbf16>, vector<32x1024xbf16>, vector<8x1024xf32> -> vector<8x1024xf32>
    %c0_3 = arith.constant 0 : index
    %c0_4 = arith.constant 0 : index
    %3 = vector.load %arg3[%c0_3, %c0_4] : memref<1x1024xf32, #tpu.memory_space<vmem>>, vector<1x1024xf32>
    %4 = vector.broadcast %3 : vector<1x1024xf32> to vector<8x1024xf32>
    %5 = arith.addf %2, %4 : vector<8x1024xf32>
    %cst_5 = arith.constant 0.000000e+00 : f32
    %6 = vector.broadcast %cst_5 : f32 to vector<8x1024xf32>
    %7 = arith.maximumf %5, %6 : vector<8x1024xf32>
    %8 = arith.truncf %7 : vector<8x1024xf32> to vector<8x1024xbf16>
    %c0_6 = arith.constant 0 : index
    %c0_7 = arith.constant 0 : index
    %9 = vector.load %arg4[%c0_6, %c0_7] : memref<1024x256xbf16, #tpu.memory_space<vmem>>, vector<1024x256xbf16>
    %cst_8 = arith.constant dense<0.000000e+00> : vector<8x256xf32>
    %10 = tpu.matmul %8, %9, %cst_8 {dimension_numbers = #tpu.dot_dimension_numbers<[1], [0], [0], [1], [0, 0, 1, 1], [], []>} : vector<8x1024xbf16>, vector<1024x256xbf16>, vector<8x256xf32> -> vector<8x256xf32>
    %c0_9 = arith.constant 0 : index
    %c0_10 = arith.constant 0 : index
    %11 = vector.load %arg5[%c0_9, %c0_10] : memref<1x256xf32, #tpu.memory_space<vmem>>, vector<1x256xf32>
    %12 = vector.broadcast %11 : vector<1x256xf32> to vector<8x256xf32>
    %13 = arith.addf %10, %12 : vector<8x256xf32>
    %cst_11 = arith.constant 0.000000e+00 : f32
    %14 = vector.broadcast %cst_11 : f32 to vector<8x256xf32>
    %15 = arith.maximumf %13, %14 : vector<8x256xf32>
    %16 = arith.truncf %15 : vector<8x256xf32> to vector<8x256xbf16>
    %c0_12 = arith.constant 0 : index
    %c0_13 = arith.constant 0 : index
    %17 = vector.load %arg6[%c0_12, %c0_13] : memref<256x128xbf16, #tpu.memory_space<vmem>>, vector<256x128xbf16>
    %cst_14 = arith.constant dense<0.000000e+00> : vector<8x128xf32>
    %18 = tpu.matmul %16, %17, %cst_14 {dimension_numbers = #tpu.dot_dimension_numbers<[1], [0], [0], [1], [0, 0, 1, 1], [], []>} : vector<8x256xbf16>, vector<256x128xbf16>, vector<8x128xf32> -> vector<8x128xf32>
    %c0_15 = arith.constant 0 : index
    %c0_16 = arith.constant 0 : index
    %19 = vector.load %arg7[%c0_15, %c0_16] : memref<1x128xf32, #tpu.memory_space<vmem>>, vector<1x128xf32>
    %20 = vector.broadcast %19 : vector<1x128xf32> to vector<8x128xf32>
    %21 = arith.addf %18, %20 : vector<8x128xf32>
    %c0_17 = arith.constant 0 : index
    %c0_18 = arith.constant 0 : index
    %22 = vector.load %arg8[%c0_17, %c0_18] : memref<8x128xf32, #tpu.memory_space<vmem>>, vector<8x128xf32>
    tpu.vector_store %arg8[%c0_17, %c0_18], %21 {strides = array<i32>} : memref<8x128xf32, #tpu.memory_space<vmem>>, vector<8x128xf32>,
    return
  }
  func.func @transform_0(%arg0: i32) -> (i32, i32) {
    %c0_i32 = arith.constant 0 : i32
    %c0_i32_0 = arith.constant 0 : i32
    return %arg0, %c0_i32 : i32, i32
  }
  func.func @transform_1(%arg0: i32) -> (i32, i32) {
    %c0_i32 = arith.constant 0 : i32
    %c0_i32_0 = arith.constant 0 : i32
    %c0_i32_1 = arith.constant 0 : i32
    return %c0_i32, %c0_i32_0 : i32, i32
  }
  func.func @transform_2(%arg0: i32) -> (i32, i32) {
    %c0_i32 = arith.constant 0 : i32
    %c0_i32_0 = arith.constant 0 : i32
    %c0_i32_1 = arith.constant 0 : i32
    return %c0_i32, %c0_i32_0 : i32, i32
  }
  func.func @transform_3(%arg0: i32) -> (i32, i32) {
    %c0_i32 = arith.constant 0 : i32
    %c0_i32_0 = arith.constant 0 : i32
    %c0_i32_1 = arith.constant 0 : i32
    return %c0_i32, %c0_i32_0 : i32, i32
  }
  func.func @transform_4(%arg0: i32) -> (i32, i32) {
    %c0_i32 = arith.constant 0 : i32
    %c0_i32_0 = arith.constant 0 : i32
    %c0_i32_1 = arith.constant 0 : i32
    return %c0_i32, %c0_i32_0 : i32, i32
  }
  func.func @transform_5(%arg0: i32) -> (i32, i32) {
    %c0_i32 = arith.constant 0 : i32
    %c0_i32_0 = arith.constant 0 : i32
    %c0_i32_1 = arith.constant 0 : i32
    return %c0_i32, %c0_i32_0 : i32, i32
  }
  func.func @transform_6(%arg0: i32) -> (i32, i32) {
    %c0_i32 = arith.constant 0 : i32
    %c0_i32_0 = arith.constant 0 : i32
    %c0_i32_1 = arith.constant 0 : i32
    return %c0_i32, %c0_i32_0 : i32, i32
  }
  func.func @transform_7(%arg0: i32) -> (i32, i32) {
    %c0_i32 = arith.constant 0 : i32
    %c0_i32_0 = arith.constant 0 : i32
    return %arg0, %c0_i32 : i32, i32
  }
}

module attributes {stable_mosaic.version = 11 : i64} {
  func.func @_mlp_kernel(%arg0: i32, %arg1: memref<8x32xbf16, #tpu.memory_space<vmem>>, %arg2: memref<32x1024xbf16, #tpu.memory_space<vmem>>, %arg3: memref<1x1024xf32, #tpu.memory_space<vmem>>, %arg4: memref<1024x256xbf16, #tpu.memory_space<vmem>>, %arg5: memref<1x256xf32, #tpu.memory_space<vmem>>, %arg6: memref<256x128xbf16, #tpu.memory_space<vmem>>, %arg7: memref<1x128xf32, #tpu.memory_space<vmem>>, %arg8: memref<8x128xf32, #tpu.memory_space<vmem>>) attributes {dimension_semantics = [#tpu.dimension_semantics<parallel>], iteration_bounds = array<i64: 1>, scalar_prefetch = 0 : i64, scratch_operands = 0 : i64, tpu.core_type = #tpu.core_type<tc>, window_params = [{transform_indices = @transform_0, window_bounds = array<i64: 8, 32>}, {pipeline_mode = #tpu.pipeline_mode<synchronous>, transform_indices = @transform_1, window_bounds = array<i64: 32, 1024>}, {pipeline_mode = #tpu.pipeline_mode<synchronous>, transform_indices = @transform_2, window_bounds = array<i64: 1, 1024>}, {pipeline_mode = #tpu.pipeline_mode<synchronous>, transform_indices = @transform_3, window_bounds = array<i64: 1024, 256>}, {pipeline_mode = #tpu.pipeline_mode<synchronous>, transform_indices = @transform_4, window_bounds = array<i64: 1, 256>}, {pipeline_mode = #tpu.pipeline_mode<synchronous>, transform_indices = @transform_5, window_bounds = array<i64: 256, 128>}, {pipeline_mode = #tpu.pipeline_mode<synchronous>, transform_indices = @transform_6, window_bounds = array<i64: 1, 128>}, {transform_indices = @transform_7, window_bounds = array<i64: 8, 128>}]} {
    %c0 = arith.constant 0 : index
    %c0_0 = arith.constant 0 : index
    %0 = vector.load %arg1[%c0, %c0_0] : memref<8x32xbf16, #tpu.memory_space<vmem>>, vector<8x32xbf16>
    %c0_1 = arith.constant 0 : index
    %c0_2 = arith.constant 0 : index
    %1 = vector.load %arg2[%c0_1, %c0_2] : memref<32x1024xbf16, #tpu.memory_space<vmem>>, vector<32x1024xbf16>
    %cst = arith.constant dense<0.000000e+00> : vector<8x1024xf32>
    %2 = tpu.matmul %0, %1, %cst {dimension_numbers = #tpu.dot_dimension_numbers<[1], [0], [0], [1], [0, 0, 1, 1], [], []>} : vector<8x32xbf16>, vector<32x1024xbf16>, vector<8x1024xf32> -> vector<8x1024xf32>
    %c0_3 = arith.constant 0 : index
    %c0_4 = arith.constant 0 : index
    %3 = vector.load %arg3[%c0_3, %c0_4] : memref<1x1024xf32, #tpu.memory_space<vmem>>, vector<1x1024xf32>
    %4 = vector.broadcast %3 : vector<1x1024xf32> to vector<8x1024xf32>
    %5 = arith.addf %2, %4 : vector<8x1024xf32>
    %cst_5 = arith.constant 0.000000e+00 : f32
    %6 = vector.broadcast %cst_5 : f32 to vector<8x1024xf32>
    %7 = arith.maximumf %5, %6 : vector<8x1024xf32>
    %8 = arith.truncf %7 : vector<8x1024xf32> to vector<8x1024xbf16>
    %c0_6 = arith.constant 0 : index
    %c0_7 = arith.constant 0 : index
    %9 = vector.load %arg4[%c0_6, %c0_7] : memref<1024x256xbf16, #tpu.memory_space<vmem>>, vector<1024x256xbf16>
    %cst_8 = arith.constant dense<0.000000e+00> : vector<8x256xf32>
    %10 = tpu.matmul %8, %9, %cst_8 {dimension_numbers = #tpu.dot_dimension_numbers<[1], [0], [0], [1], [0, 0, 1, 1], [], []>} : vector<8x1024xbf16>, vector<1024x256xbf16>, vector<8x256xf32> -> vector<8x256xf32>
    %c0_9 = arith.constant 0 : index
    %c0_10 = arith.constant 0 : index
    %11 = vector.load %arg5[%c0_9, %c0_10] : memref<1x256xf32, #tpu.memory_space<vmem>>, vector<1x256xf32>
    %12 = vector.broadcast %11 : vector<1x256xf32> to vector<8x256xf32>
    %13 = arith.addf %10, %12 : vector<8x256xf32>
    %cst_11 = arith.constant 0.000000e+00 : f32
    %14 = vector.broadcast %cst_11 : f32 to vector<8x256xf32>
    %15 = arith.maximumf %13, %14 : vector<8x256xf32>
    %16 = arith.truncf %15 : vector<8x256xf32> to vector<8x256xbf16>
    %c0_12 = arith.constant 0 : index
    %c0_13 = arith.constant 0 : index
    %17 = vector.load %arg6[%c0_12, %c0_13] : memref<256x128xbf16, #tpu.memory_space<vmem>>, vector<256x128xbf16>
    %cst_14 = arith.constant dense<0.000000e+00> : vector<8x128xf32>
    %18 = tpu.matmul %16, %17, %cst_14 {dimension_numbers = #tpu.dot_dimension_numbers<[1], [0], [0], [1], [0, 0, 1, 1], [], []>} : vector<8x256xbf16>, vector<256x128xbf16>, vector<8x128xf32> -> vector<8x128xf32>
    %c0_15 = arith.constant 0 : index
    %c0_16 = arith.constant 0 : index
    %19 = vector.load %arg7[%c0_15, %c0_16] : memref<1x128xf32, #tpu.memory_space<vmem>>, vector<1x128xf32>
    %20 = vector.broadcast %19 : vector<1x128xf32> to vector<8x128xf32>
    %21 = arith.addf %18, %20 : vector<8x128xf32>
    %c0_17 = arith.constant 0 : index
    %c0_18 = arith.constant 0 : index
    %22 = vector.load %arg8[%c0_17, %c0_18] : memref<8x128xf32, #tpu.memory_space<vmem>>, vector<8x128xf32>
    tpu.vector_store %arg8[%c0_17, %c0_18], %21 {strides = array<i32>} : memref<8x128xf32, #tpu.memory_space<vmem>>, vector<8x128xf32>,
    return
  }
  func.func @transform_0(%arg0: i32) -> (i32, i32) {
    %c0_i32 = arith.constant 0 : i32
    %c0_i32_0 = arith.constant 0 : i32
    return %arg0, %c0_i32 : i32, i32
  }
  func.func @transform_1(%arg0: i32) -> (i32, i32) {
    %c0_i32 = arith.constant 0 : i32
    %c0_i32_0 = arith.constant 0 : i32
    %c0_i32_1 = arith.constant 0 : i32
    return %c0_i32, %c0_i32_0 : i32, i32
  }
  func.func @transform_2(%arg0: i32) -> (i32, i32) {
    %c0_i32 = arith.constant 0 : i32
    %c0_i32_0 = arith.constant 0 : i32
    %c0_i32_1 = arith.constant 0 : i32
    return %c0_i32, %c0_i32_0 : i32, i32
  }
  func.func @transform_3(%arg0: i32) -> (i32, i32) {
    %c0_i32 = arith.constant 0 : i32
    %c0_i32_0 = arith.constant 0 : i32
    %c0_i32_1 = arith.constant 0 : i32
    return %c0_i32, %c0_i32_0 : i32, i32
  }
  func.func @transform_4(%arg0: i32) -> (i32, i32) {
    %c0_i32 = arith.constant 0 : i32
    %c0_i32_0 = arith.constant 0 : i32
    %c0_i32_1 = arith.constant 0 : i32
    return %c0_i32, %c0_i32_0 : i32, i32
  }
  func.func @transform_5(%arg0: i32) -> (i32, i32) {
    %c0_i32 = arith.constant 0 : i32
    %c0_i32_0 = arith.constant 0 : i32
    %c0_i32_1 = arith.constant 0 : i32
    return %c0_i32, %c0_i32_0 : i32, i32
  }
  func.func @transform_6(%arg0: i32) -> (i32, i32) {
    %c0_i32 = arith.constant 0 : i32
    %c0_i32_0 = arith.constant 0 : i32
    %c0_i32_1 = arith.constant 0 : i32
    return %c0_i32, %c0_i32_0 : i32, i32
  }
  func.func @transform_7(%arg0: i32) -> (i32, i32) {
    %c0_i32 = arith.constant 0 : i32
    %c0_i32_0 = arith.constant 0 : i32
    return %arg0, %c0_i32 : i32, i32
  }
}

</mosaic_0001>

<llo_original>
// kernel: tpu_custom_call.1
$region0: #{tpu_custom_call.1}
  #allocation0 [shape = 'u32[]', space=smem, size = 0x4, offset = 0x4, fixed_abs, tag = 'smem constant byte address 0x4 - core index']
  #allocation1 [shape = 'u32[72,128]{1,0:T(1,128)}', space=vmem, size = 0x9000, scoped, tag = 'internal scratch']
  %s0 = inlined_call_operand.hbm [shape: bf16[8,32], index: 0, kind: input, shape index: {}]
  %s1 = inlined_call_operand.hbm [shape: bf16[32,1024], index: 1, kind: input, shape index: {}]
  %s2 = inlined_call_operand.hbm [shape: f32[1,1024], index: 2, kind: input, shape index: {}]
  %s3 = inlined_call_operand.hbm [shape: bf16[1024,256], index: 3, kind: input, shape index: {}]
  %s4 = inlined_call_operand.vmem [shape: f32[1,256], index: 4, kind: input, shape index: {}]
  %s5 = inlined_call_operand.hbm [shape: bf16[256,128], index: 5, kind: input, shape index: {}]
  %s6 = inlined_call_operand.vmem [shape: f32[1,128], index: 6, kind: input, shape index: {}]
  %s7 = inlined_call_operand.hbm [shape: f32[8,128], index: 7, kind: output, shape index: {}]
  %s8 = sld [smem:[#allocation0]]
  $region58: #{tpu_custom_call.1} parent=0
    _
  %s10 = ssub.s32 1, %s8
  %s11 = scalar_select 0, %s10, %s8
  $region1: #{tpu_custom_call.1} parent=0
    #allocation2 [shape = 'u8[2048]{0}', space=vmem, size = 0x800, scoped, tag = 'input window, operand 0, single buffered']
    #allocation3 [shape = 's32[1]{0}', space=sflag, size = 0x4, scoped, tag = 'scoped memory for tpu_custom_call.1']
    #allocation4 [shape = 's32[1]{0}', space=sflag, size = 0x4, scoped, tag = 'scoped memory for tpu_custom_call.1']
    #allocation5 [shape = 'u8[65536]{0}', space=vmem, size = 0x10000, scoped, tag = 'input window, operand 1, single buffered']
    #allocation6 [shape = 's32[1]{0}', space=sflag, size = 0x4, scoped, tag = 'scoped memory for tpu_custom_call.1']
    #allocation7 [shape = 'u8[4096]{0}', space=vmem, size = 0x1000, scoped, tag = 'input window, operand 2, single buffered']
    #allocation8 [shape = 'u8[524288]{0}', space=vmem, size = 0x80000, scoped, tag = 'input window, operand 3, single buffered']
    #allocation9 [shape = 's32[1]{0}', space=sflag, size = 0x4, scoped, tag = 'scoped memory for tpu_custom_call.1']
    #allocation10 [shape = 'u8[65536]{0}', space=vmem, size = 0x10000, scoped, tag = 'input window, operand 5, single buffered']
    #allocation11 [shape = 'u8[4096]{0}', space=vmem, size = 0x1000, scoped, tag = 'output window, operand 0, single buffered']
    %12 = vsyncpa [#allocation3], 0
    %13 = vsyncpa [#allocation6], 0
    %14 = vsyncpa [#allocation9], 0
    %15 = vsyncpa [#allocation4], 0
    // Predicated region
    $region2: #{tpu_custom_call.1} parent=1 // pred_check
      _
    $region3: #{tpu_custom_call.1} parent=1 // pred_check_branch
      %17 = sbr.rel (0) target = $region5
    $region4: #{tpu_custom_call.1} parent=1 // pred_region
      %19 = vsyncadd [#allocation3], 0
      %s21 = sshll.u32 %s0, 4
      %s22 = int_to_ptr.hbm [resolvable:$true] %s21
      %s23 = sshll.u32 [#allocation2], 4
      %s24 = int_to_ptr.vmem [resolvable:$true] %s23
      %26 = dma.hbm_to_vmem [thread:$0]  %s22, 64, %s24, [#allocation3]
    $region5: #{tpu_custom_call.1} parent=1 // pred_fallthru
      _
    // Predicated region
    $region6: #{tpu_custom_call.1} parent=1 // pred_check
      _
    $region7: #{tpu_custom_call.1} parent=1 // pred_check_branch
      %28 = sbr.rel (0) target = $region9
    $region8: #{tpu_custom_call.1} parent=1 // pred_region
      %30 = vsyncadd [#allocation6], 0
      %s31 = sshll.u32 %s1, 4
      %s32 = int_to_ptr.hbm [resolvable:$true] %s31
      %s33 = sshll.u32 [#allocation5], 4
      %s34 = int_to_ptr.vmem [resolvable:$true] %s33
      %39 = dma.hbm_to_vmem [thread:$0]  %s32, 2048, %s34, [#allocation6], 512, 512, 32
    $region9: #{tpu_custom_call.1} parent=1 // pred_fallthru
      _
    // Predicated region
    $region10: #{tpu_custom_call.1} parent=1 // pred_check
      _
    $region11: #{tpu_custom_call.1} parent=1 // pred_check_branch
      %41 = sbr.rel (0) target = $region13
    $region12: #{tpu_custom_call.1} parent=1 // pred_region
      %43 = vsyncadd [#allocation6], 0
      %s45 = sshll.u32 %s2, 4
      %s46 = int_to_ptr.hbm [resolvable:$true] %s45
      %s47 = sshll.u32 [#allocation7], 4
      %s48 = int_to_ptr.vmem [resolvable:$true] %s47
      %50 = dma.hbm_to_vmem [thread:$0]  %s46, 128, %s48, [#allocation6]
    $region13: #{tpu_custom_call.1} parent=1 // pred_fallthru
      _
    // Predicated region
    $region14: #{tpu_custom_call.1} parent=1 // pred_check
      _
    $region15: #{tpu_custom_call.1} parent=1 // pred_check_branch
      %52 = sbr.rel (0) target = $region17
    $region16: #{tpu_custom_call.1} parent=1 // pred_region
      %54 = vsyncadd [#allocation9], 0
      %s55 = sshll.u32 %s3, 4
      %s56 = int_to_ptr.hbm [resolvable:$true] %s55
      %s57 = sshll.u32 [#allocation8], 4
      %s58 = int_to_ptr.vmem [resolvable:$true] %s57
      %63 = dma.hbm_to_vmem [thread:$0]  %s56, 16384, %s58, [#allocation9], 128, 128, 8
    $region17: #{tpu_custom_call.1} parent=1 // pred_fallthru
      _
    // Predicated region
    $region18: #{tpu_custom_call.1} parent=1 // pred_check
      _
    $region19: #{tpu_custom_call.1} parent=1 // pred_check_branch
      %65 = sbr.rel (0) target = $region21
    $region20: #{tpu_custom_call.1} parent=1 // pred_region
      _
    $region21: #{tpu_custom_call.1} parent=1 // pred_fallthru
      _
    // Predicated region
    $region22: #{tpu_custom_call.1} parent=1 // pred_check
      _
    $region23: #{tpu_custom_call.1} parent=1 // pred_check_branch
      %67 = sbr.rel (0) target = $region25
    $region24: #{tpu_custom_call.1} parent=1 // pred_region
      %69 = vsyncadd [#allocation9], 0
      %s70 = sshll.u32 %s5, 4
      %s71 = int_to_ptr.hbm [resolvable:$true] %s70
      %s72 = sshll.u32 [#allocation10], 4
      %s73 = int_to_ptr.vmem [resolvable:$true] %s72
      %78 = dma.hbm_to_vmem [thread:$0]  %s71, 2048, %s73, [#allocation9], 64, 64, 4
    $region25: #{tpu_custom_call.1} parent=1 // pred_fallthru
      _
    // Predicated region
    $region26: #{tpu_custom_call.1} parent=1 // pred_check
      _
    $region27: #{tpu_custom_call.1} parent=1 // pred_check_branch
      %80 = sbr.rel (0) target = $region29
    $region28: #{tpu_custom_call.1} parent=1 // pred_region
      _
    $region29: #{tpu_custom_call.1} parent=1 // pred_fallthru
      _
    // Predicated region
    $region30: #{tpu_custom_call.1} parent=1 // pred_check
      _
    $region31: #{tpu_custom_call.1} parent=1 // pred_check_branch
      %82 = sbr.rel (0) target = $region33
    $region32: #{tpu_custom_call.1} parent=1 // pred_region
      %84 = dma.done [#allocation3], 64
    $region33: #{tpu_custom_call.1} parent=1 // pred_fallthru
      _
    // Predicated region
    $region34: #{tpu_custom_call.1} parent=1 // pred_check
      _
    $region35: #{tpu_custom_call.1} parent=1 // pred_check_branch
      %86 = sbr.rel (0) target = $region37
    $region36: #{tpu_custom_call.1} parent=1 // pred_region
      %88 = dma.done [#allocation6], 2048
    $region37: #{tpu_custom_call.1} parent=1 // pred_fallthru
      _
    // Predicated region
    $region38: #{tpu_custom_call.1} parent=1 // pred_check
      _
    $region39: #{tpu_custom_call.1} parent=1 // pred_check_branch
      %90 = sbr.rel (0) target = $region41
    $region40: #{tpu_custom_call.1} parent=1 // pred_region
      %92 = dma.done [#allocation6], 128
    $region41: #{tpu_custom_call.1} parent=1 // pred_fallthru
      _
    // Predicated region
    $region42: #{tpu_custom_call.1} parent=1 // pred_check
      _
    $region43: #{tpu_custom_call.1} parent=1 // pred_check_branch
      %94 = sbr.rel (0) target = $region45
    $region44: #{tpu_custom_call.1} parent=1 // pred_region
      %96 = dma.done [#allocation9], 16384
    $region45: #{tpu_custom_call.1} parent=1 // pred_fallthru
      _
    // Predicated region
    $region46: #{tpu_custom_call.1} parent=1 // pred_check
      _
    $region47: #{tpu_custom_call.1} parent=1 // pred_check_branch
      %98 = sbr.rel (0) target = $region49
    $region48: #{tpu_custom_call.1} parent=1 // pred_region
      %100 = dma.done [#allocation9], 2048
    $region49: #{tpu_custom_call.1} parent=1 // pred_fallthru
      _
    %v102 = vld [vmem:[#allocation2] sm:$0xf]
    %v103 = vld [vmem:[#allocation5] sm:$0xff]
    %v104 = vld [vmem:[#allocation5 + $0x8] sm:$0xff]
    %v105 = vld [vmem:[#allocation5 + $0x10] sm:$0xff]
    %v106 = vld [vmem:[#allocation5 + $0x18] sm:$0xff]
    %v107 = vld [vmem:[#allocation5 + $0x20] sm:$0xff]
    %v108 = vld [vmem:[#allocation5 + $0x28] sm:$0xff]
    %v109 = vld [vmem:[#allocation5 + $0x30] sm:$0xff]
    %v110 = vld [vmem:[#allocation5 + $0x38] sm:$0xff]
    %v111 = vld [vmem:[#allocation5 + $0x40] sm:$0xff]
    %v112 = vld [vmem:[#allocation5 + $0x48] sm:$0xff]
    %v113 = vld [vmem:[#allocation5 + $0x50] sm:$0xff]
    %v114 = vld [vmem:[#allocation5 + $0x58] sm:$0xff]
    %v115 = vld [vmem:[#allocation5 + $0x60] sm:$0xff]
    %v116 = vld [vmem:[#allocation5 + $0x68] sm:$0xff]
    %v117 = vld [vmem:[#allocation5 + $0x70] sm:$0xff]
    %v118 = vld [vmem:[#allocation5 + $0x78] sm:$0xff]
    %v119 = vld [vmem:[#allocation7] sm:$0xff]
    %v121 = vperm.slane %v119, 0
    %v122 = vperm.slane %v119, 1
    %v123 = vperm.slane %v119, 2
    %v124 = vperm.slane %v119, 3
    %v125 = vperm.slane %v119, 4
    %v126 = vperm.slane %v119, 5
    %v127 = vperm.slane %v119, 6
    %v128 = vperm.slane %v119, 7
    %v153 = vunpack.c.l.b16 %v103
    %v154 = vunpack.c.h.b16 %v103
    %v155 = vunpack.c.l.b16 %v104
    %v156 = vunpack.c.h.b16 %v104
    %v157 = vunpack.c.l.b16 %v105
    %v158 = vunpack.c.h.b16 %v105
    %v159 = vunpack.c.l.b16 %v106
    %v160 = vunpack.c.h.b16 %v106
    %v161 = vunpack.c.l.b16 %v107
    %v162 = vunpack.c.h.b16 %v107
    %v163 = vunpack.c.l.b16 %v108
    %v164 = vunpack.c.h.b16 %v108
    %v165 = vunpack.c.l.b16 %v109
    %v166 = vunpack.c.h.b16 %v109
    %v167 = vunpack.c.l.b16 %v110
    %v168 = vunpack.c.h.b16 %v110
    %v169 = vunpack.c.l.b16 %v111
    %v170 = vunpack.c.h.b16 %v111
    %v171 = vunpack.c.l.b16 %v112
    %v172 = vunpack.c.h.b16 %v112
    %v173 = vunpack.c.l.b16 %v113
    %v174 = vunpack.c.h.b16 %v113
    %v175 = vunpack.c.l.b16 %v114
    %v176 = vunpack.c.h.b16 %v114
    %v177 = vunpack.c.l.b16 %v115
    %v178 = vunpack.c.h.b16 %v115
    %v179 = vunpack.c.l.b16 %v116
    %v180 = vunpack.c.h.b16 %v116
    %v181 = vunpack.c.l.b16 %v117
    %v182 = vunpack.c.h.b16 %v117
    %v183 = vunpack.c.l.b16 %v118
    %v184 = vunpack.c.h.b16 %v118
    %v185 = vpack.c.b16 %v161, %v153
    %v186 = vpack.c.b16 %v162, %v154
    %v187 = vpack.c.b16 %v163, %v155
    %v188 = vpack.c.b16 %v164, %v156
    %v189 = vpack.c.b16 %v165, %v157
    %v190 = vpack.c.b16 %v166, %v158
    %v191 = vpack.c.b16 %v167, %v159
    %v192 = vpack.c.b16 %v168, %v160
    %v193 = vpack.c.b16 %v177, %v169
    %v194 = vpack.c.b16 %v178, %v170
    %v195 = vpack.c.b16 %v179, %v171
    %v196 = vpack.c.b16 %v180, %v172
    %v197 = vpack.c.b16 %v181, %v173
    %v198 = vpack.c.b16 %v182, %v174
    %v199 = vpack.c.b16 %v183, %v175
    %v200 = vpack.c.b16 %v184, %v176
    %vm217 = vcmask 261120
    %v219 = vsel %vm217, %v102, 0
    %221 = vmatpush.bf16.msra.mxu0 0
    %222 = vmatpush.bf16.msra.mxu0 0
    %223 = vmatpush.bf16.msra.mxu0 0
    %224 = vmatpush.bf16.msra.mxu0 0
    %225 = vmatpush.bf16.msra.mxu0 0
    %226 = vmatpush.bf16.msra.mxu0 0
    %227 = vmatpush.bf16.msra.mxu0 %v193
    %228 = vmatpush.bf16.msra.mxu0 %v185
    %229 = vmatmul.bf16.gmra.mxu0 %v219
    %v230 = vpop.f32.mrf.mxu0
    %v231 = vadd.f32 %v121, %v230
    %v232 = vpop.f32.mrf.mxu0
    %233 = vdwg.mxu0
    %234 = vmatpush.bf16.msra.mxu0 0
    %235 = vmatpush.bf16.msra.mxu0 0
    %236 = vmatpush.bf16.msra.mxu0 0
    %237 = vmatpush.bf16.msra.mxu0 0
    %238 = vmatpush.bf16.msra.mxu0 0
    %239 = vmatpush.bf16.msra.mxu0 0
    %240 = vmatpush.bf16.msra.mxu0 %v194
    %241 = vmatpush.bf16.msra.mxu0 %v186
    %242 = vmatmul.bf16.gmra.mxu0 %v219
    %v243 = vpop.f32.mrf.mxu0
    %v244 = vadd.f32 %v122, %v243
    %v245 = vpop.f32.mrf.mxu0
    %246 = vdwg.mxu0
    %247 = vmatpush.bf16.msra.mxu0 0
    %248 = vmatpush.bf16.msra.mxu0 0
    %249 = vmatpush.bf16.msra.mxu0 0
    %250 = vmatpush.bf16.msra.mxu0 0
    %251 = vmatpush.bf16.msra.mxu0 0
    %252 = vmatpush.bf16.msra.mxu0 0
    %253 = vmatpush.bf16.msra.mxu0 %v195
    %254 = vmatpush.bf16.msra.mxu0 %v187
    %255 = vmatmul.bf16.gmra.mxu0 %v219
    %v256 = vpop.f32.mrf.mxu0
    %v257 = vadd.f32 %v123, %v256
    %v258 = vpop.f32.mrf.mxu0
    %259 = vdwg.mxu0
    %260 = vmatpush.bf16.msra.mxu0 0
    %261 = vmatpush.bf16.msra.mxu0 0
    %262 = vmatpush.bf16.msra.mxu0 0
    %263 = vmatpush.bf16.msra.mxu0 0
    %264 = vmatpush.bf16.msra.mxu0 0
    %265 = vmatpush.bf16.msra.mxu0 0
    %266 = vmatpush.bf16.msra.mxu0 %v196
    %267 = vmatpush.bf16.msra.mxu0 %v188
    %268 = vmatmul.bf16.gmra.mxu0 %v219
    %v269 = vpop.f32.mrf.mxu0
    %v270 = vadd.f32 %v124, %v269
    %v271 = vpop.f32.mrf.mxu0
    %272 = vdwg.mxu0
    %273 = vmatpush.bf16.msra.mxu0 0
    %274 = vmatpush.bf16.msra.mxu0 0
    %275 = vmatpush.bf16.msra.mxu0 0
    %276 = vmatpush.bf16.msra.mxu0 0
    %277 = vmatpush.bf16.msra.mxu0 0
    %278 = vmatpush.bf16.msra.mxu0 0
    %279 = vmatpush.bf16.msra.mxu0 %v197
    %280 = vmatpush.bf16.msra.mxu0 %v189
    %281 = vmatmul.bf16.gmra.mxu0 %v219
    %v282 = vpop.f32.mrf.mxu0
    %v283 = vadd.f32 %v125, %v282
    %v284 = vpop.f32.mrf.mxu0
    %285 = vdwg.mxu0
    %286 = vmatpush.bf16.msra.mxu0 0
    %287 = vmatpush.bf16.msra.mxu0 0
    %288 = vmatpush.bf16.msra.mxu0 0
    %289 = vmatpush.bf16.msra.mxu0 0
    %290 = vmatpush.bf16.msra.mxu0 0
    %291 = vmatpush.bf16.msra.mxu0 0
    %292 = vmatpush.bf16.msra.mxu0 %v198
    %293 = vmatpush.bf16.msra.mxu0 %v190
    %294 = vmatmul.bf16.gmra.mxu0 %v219
    %v295 = vpop.f32.mrf.mxu0
    %v296 = vadd.f32 %v126, %v295
    %v297 = vpop.f32.mrf.mxu0
    %298 = vdwg.mxu0
    %299 = vmatpush.bf16.msra.mxu0 0
    %300 = vmatpush.bf16.msra.mxu0 0
    %301 = vmatpush.bf16.msra.mxu0 0
    %302 = vmatpush.bf16.msra.mxu0 0
    %303 = vmatpush.bf16.msra.mxu0 0
    %304 = vmatpush.bf16.msra.mxu0 0
    %305 = vmatpush.bf16.msra.mxu0 %v199
    %306 = vmatpush.bf16.msra.mxu0 %v191
    %307 = vmatmul.bf16.gmra.mxu0 %v219
    %v308 = vpop.f32.mrf.mxu0
    %v309 = vadd.f32 %v127, %v308
    %v310 = vpop.f32.mrf.mxu0
    %311 = vdwg.mxu0
    %312 = vmatpush.bf16.msra.mxu0 0
    %313 = vmatpush.bf16.msra.mxu0 0
    %314 = vmatpush.bf16.msra.mxu0 0
    %315 = vmatpush.bf16.msra.mxu0 0
    %316 = vmatpush.bf16.msra.mxu0 0
    %317 = vmatpush.bf16.msra.mxu0 0
    %318 = vmatpush.bf16.msra.mxu0 %v200
    %319 = vmatpush.bf16.msra.mxu0 %v192
    %320 = vmatmul.bf16.gmra.mxu0 %v219
    %v321 = vpop.f32.mrf.mxu0
    %v322 = vadd.f32 %v128, %v321
    %v323 = vpop.f32.mrf.mxu0
    %324 = vdwg.mxu0
    %v325 = vmax.f32 %v231, 0.0
    %v326 = vmax.f32 %v244, 0.0
    %v327 = vmax.f32 %v257, 0.0
    %v328 = vmax.f32 %v270, 0.0
    %v329 = vmax.f32 %v283, 0.0
    %v330 = vmax.f32 %v296, 0.0
    %v331 = vmax.f32 %v309, 0.0
    %v332 = vmax.f32 %v322, 0.0
    %v333 = vpack.c.bf16 %v325, %v325
    %v334 = vpack.c.bf16 %v326, %v326
    %v335 = vpack.c.bf16 %v327, %v327
    %v336 = vpack.c.bf16 %v328, %v328
    %v337 = vpack.c.bf16 %v329, %v329
    %v338 = vpack.c.bf16 %v330, %v330
    %v339 = vpack.c.bf16 %v331, %v331
    %v340 = vpack.c.bf16 %v332, %v332
    %v341 = vld [vmem:[#allocation8] sm:$0xff]
    %v342 = vld [vmem:[#allocation8 + $0x8] sm:$0xff]
    %v343 = vld [vmem:[#allocation8 + $0x10] sm:$0xff]
    %v344 = vld [vmem:[#allocation8 + $0x18] sm:$0xff]
    %v345 = vld [vmem:[#allocation8 + $0x20] sm:$0xff]
    %v346 = vld [vmem:[#allocation8 + $0x28] sm:$0xff]
    %v347 = vld [vmem:[#allocation8 + $0x30] sm:$0xff]
    %v348 = vld [vmem:[#allocation8 + $0x38] sm:$0xff]
    %v349 = vld [vmem:[#allocation8 + $0x40] sm:$0xff]
    %v350 = vld [vmem:[#allocation8 + $0x48] sm:$0xff]
    %v351 = vld [vmem:[#allocation8 + $0x50] sm:$0xff]
    %v352 = vld [vmem:[#allocation8 + $0x58] sm:$0xff]
    %v353 = vld [vmem:[#allocation8 + $0x60] sm:$0xff]
    %v354 = vld [vmem:[#allocation8 + $0x68] sm:$0xff]
    %v355 = vld [vmem:[#allocation8 + $0x70] sm:$0xff]
    %v356 = vld [vmem:[#allocation8 + $0x78] sm:$0xff]
    %v357 = vld [vmem:[#allocation8 + $0x80] sm:$0xff]
    %v358 = vld [vmem:[#allocation8 + $0x88] sm:$0xff]
    %v359 = vld [vmem:[#allocation8 + $0x90] sm:$0xff]
    %v360 = vld [vmem:[#allocation8 + $0x98] sm:$0xff]
    %v361 = vld [vmem:[#allocation8 + $0xa0] sm:$0xff]
    %v362 = vld [vmem:[#allocation8 + $0xa8] sm:$0xff]
    %v363 = vld [vmem:[#allocation8 + $0xb0] sm:$0xff]
    %v364 = vld [vmem:[#allocation8 + $0xb8] sm:$0xff]
    %v365 = vld [vmem:[#allocation8 + $0xc0] sm:$0xff]
    %v366 = vld [vmem:[#allocation8 + $0xc8] sm:$0xff]
    %v367 = vld [vmem:[#allocation8 + $0xd0] sm:$0xff]
    %v368 = vld [vmem:[#allocation8 + $0xd8] sm:$0xff]
    %v369 = vld [vmem:[#allocation8 + $0xe0] sm:$0xff]
    %v370 = vld [vmem:[#allocation8 + $0xe8] sm:$0xff]
    %v371 = vld [vmem:[#allocation8 + $0xf0] sm:$0xff]
    %v372 = vld [vmem:[#allocation8 + $0xf8] sm:$0xff]
    %v373 = vld [vmem:[#allocation8 + $0x100] sm:$0xff]
    %v374 = vld [vmem:[#allocation8 + $0x108] sm:$0xff]
    %v375 = vld [vmem:[#allocation8 + $0x110] sm:$0xff]
    %v376 = vld [vmem:[#allocation8 + $0x118] sm:$0xff]
    %v377 = vld [vmem:[#allocation8 + $0x120] sm:$0xff]
    %v378 = vld [vmem:[#allocation8 + $0x128] sm:$0xff]
    %v379 = vld [vmem:[#allocation8 + $0x130] sm:$0xff]
    %v380 = vld [vmem:[#allocation8 + $0x138] sm:$0xff]
    %v381 = vld [vmem:[#allocation8 + $0x140] sm:$0xff]
    %v382 = vld [vmem:[#allocation8 + $0x148] sm:$0xff]
    %v383 = vld [vmem:[#allocation8 + $0x150] sm:$0xff]
    %v384 = vld [vmem:[#allocation8 + $0x158] sm:$0xff]
    %v385 = vld [vmem:[#allocation8 + $0x160] sm:$0xff]
    %v386 = vld [vmem:[#allocation8 + $0x168] sm:$0xff]
    %v387 = vld [vmem:[#allocation8 + $0x170] sm:$0xff]
    %v388 = vld [vmem:[#allocation8 + $0x178] sm:$0xff]
    %v389 = vld [vmem:[#allocation8 + $0x180] sm:$0xff]
    %v390 = vld [vmem:[#allocation8 + $0x188] sm:$0xff]
    %v391 = vld [vmem:[#allocation8 + $0x190] sm:$0xff]
    %v392 = vld [vmem:[#allocation8 + $0x198] sm:$0xff]
    %v393 = vld [vmem:[#allocation8 + $0x1a0] sm:$0xff]
    %v394 = vld [vmem:[#allocation8 + $0x1a8] sm:$0xff]
    %v395 = vld [vmem:[#allocation8 + $0x1b0] sm:$0xff]
    %v396 = vld [vmem:[#allocation8 + $0x1b8] sm:$0xff]
    %v397 = vld [vmem:[#allocation8 + $0x1c0] sm:$0xff]
    %v398 = vld [vmem:[#allocation8 + $0x1c8] sm:$0xff]
    %v399 = vld [vmem:[#allocation8 + $0x1d0] sm:$0xff]
    %v400 = vld [vmem:[#allocation8 + $0x1d8] sm:$0xff]
    %v401 = vld [vmem:[#allocation8 + $0x1e0] sm:$0xff]
    %v402 = vld [vmem:[#allocation8 + $0x1e8] sm:$0xff]
    %v403 = vld [vmem:[#allocation8 + $0x1f0] sm:$0xff]
    %v404 = vld [vmem:[#allocation8 + $0x1f8] sm:$0xff]
    %v405 = vld [vmem:[#allocation8 + $0x200] sm:$0xff]
    %v406 = vld [vmem:[#allocation8 + $0x208] sm:$0xff]
    %v407 = vld [vmem:[#allocation8 + $0x210] sm:$0xff]
    %v408 = vld [vmem:[#allocation8 + $0x218] sm:$0xff]
    %v409 = vld [vmem:[#allocation8 + $0x220] sm:$0xff]
    %v410 = vld [vmem:[#allocation8 + $0x228] sm:$0xff]
    %v411 = vld [vmem:[#allocation8 + $0x230] sm:$0xff]
    %v412 = vld [vmem:[#allocation8 + $0x238] sm:$0xff]
    %v413 = vld [vmem:[#allocation8 + $0x240] sm:$0xff]
    %v414 = vld [vmem:[#allocation8 + $0x248] sm:$0xff]
    %v415 = vld [vmem:[#allocation8 + $0x250] sm:$0xff]
    %v416 = vld [vmem:[#allocation8 + $0x258] sm:$0xff]
    %v417 = vld [vmem:[#allocation8 + $0x260] sm:$0xff]
    %v418 = vld [vmem:[#allocation8 + $0x268] sm:$0xff]
    %v419 = vld [vmem:[#allocation8 + $0x270] sm:$0xff]
    %v420 = vld [vmem:[#allocation8 + $0x278] sm:$0xff]
    %v421 = vld [vmem:[#allocation8 + $0x280] sm:$0xff]
    %v422 = vld [vmem:[#allocation8 + $0x288] sm:$0xff]
    %v423 = vld [vmem:[#allocation8 + $0x290] sm:$0xff]
    %v424 = vld [vmem:[#allocation8 + $0x298] sm:$0xff]
    %v425 = vld [vmem:[#allocation8 + $0x2a0] sm:$0xff]
    %v426 = vld [vmem:[#allocation8 + $0x2a8] sm:$0xff]
    %v427 = vld [vmem:[#allocation8 + $0x2b0] sm:$0xff]
    %v428 = vld [vmem:[#allocation8 + $0x2b8] sm:$0xff]
    %v429 = vld [vmem:[#allocation8 + $0x2c0] sm:$0xff]
    %v430 = vld [vmem:[#allocation8 + $0x2c8] sm:$0xff]
    %v431 = vld [vmem:[#allocation8 + $0x2d0] sm:$0xff]
    %v432 = vld [vmem:[#allocation8 + $0x2d8] sm:$0xff]
    %v433 = vld [vmem:[#allocation8 + $0x2e0] sm:$0xff]
    %v434 = vld [vmem:[#allocation8 + $0x2e8] sm:$0xff]
    %v435 = vld [vmem:[#allocation8 + $0x2f0] sm:$0xff]
    %v436 = vld [vmem:[#allocation8 + $0x2f8] sm:$0xff]
    %v437 = vld [vmem:[#allocation8 + $0x300] sm:$0xff]
    %v438 = vld [vmem:[#allocation8 + $0x308] sm:$0xff]
    %v439 = vld [vmem:[#allocation8 + $0x310] sm:$0xff]
    %v440 = vld [vmem:[#allocation8 + $0x318] sm:$0xff]
    %v441 = vld [vmem:[#allocation8 + $0x320] sm:$0xff]
    %v442 = vld [vmem:[#allocation8 + $0x328] sm:$0xff]
    %v443 = vld [vmem:[#allocation8 + $0x330] sm:$0xff]
    %v444 = vld [vmem:[#allocation8 + $0x338] sm:$0xff]
    %v445 = vld [vmem:[#allocation8 + $0x340] sm:$0xff]
    %v446 = vld [vmem:[#allocation8 + $0x348] sm:$0xff]
    %v447 = vld [vmem:[#allocation8 + $0x350] sm:$0xff]
    %v448 = vld [vmem:[#allocation8 + $0x358] sm:$0xff]
    %v449 = vld [vmem:[#allocation8 + $0x360] sm:$0xff]
    %v450 = vld [vmem:[#allocation8 + $0x368] sm:$0xff]
    %v451 = vld [vmem:[#allocation8 + $0x370] sm:$0xff]
    %v452 = vld [vmem:[#allocation8 + $0x378] sm:$0xff]
    %v453 = vld [vmem:[#allocation8 + $0x380] sm:$0xff]
    %v454 = vld [vmem:[#allocation8 + $0x388] sm:$0xff]
    %v455 = vld [vmem:[#allocation8 + $0x390] sm:$0xff]
    %v456 = vld [vmem:[#allocation8 + $0x398] sm:$0xff]
    %v457 = vld [vmem:[#allocation8 + $0x3a0] sm:$0xff]
    %v458 = vld [vmem:[#allocation8 + $0x3a8] sm:$0xff]
    %v459 = vld [vmem:[#allocation8 + $0x3b0] sm:$0xff]
    %v460 = vld [vmem:[#allocation8 + $0x3b8] sm:$0xff]
    %v461 = vld [vmem:[#allocation8 + $0x3c0] sm:$0xff]
    %v462 = vld [vmem:[#allocation8 + $0x3c8] sm:$0xff]
    %v463 = vld [vmem:[#allocation8 + $0x3d0] sm:$0xff]
    %v464 = vld [vmem:[#allocation8 + $0x3d8] sm:$0xff]
    %v465 = vld [vmem:[#allocation8 + $0x3e0] sm:$0xff]
    %v466 = vld [vmem:[#allocation8 + $0x3e8] sm:$0xff]
    %v467 = vld [vmem:[#allocation8 + $0x3f0] sm:$0xff]
    %v468 = vld [vmem:[#allocation8 + $0x3f8] sm:$0xff]
    %v469 = vld [vmem:[%s4] sm:$0x3]
    %v471 = vperm.slane %v469, 0
    %v472 = vperm.slane %v469, 1
    %v603 = vunpack.c.l.b16 %v341
    %v604 = vunpack.c.h.b16 %v341
    %v605 = vunpack.c.l.b16 %v342
    %v606 = vunpack.c.h.b16 %v342
    %v607 = vunpack.c.l.b16 %v343
    %v608 = vunpack.c.h.b16 %v343
    %v609 = vunpack.c.l.b16 %v344
    %v610 = vunpack.c.h.b16 %v344
    %v611 = vunpack.c.l.b16 %v345
    %v612 = vunpack.c.h.b16 %v345
    %v613 = vunpack.c.l.b16 %v346
    %v614 = vunpack.c.h.b16 %v346
    %v615 = vunpack.c.l.b16 %v347
    %v616 = vunpack.c.h.b16 %v347
    %v617 = vunpack.c.l.b16 %v348
    %v618 = vunpack.c.h.b16 %v348
    %v619 = vunpack.c.l.b16 %v349
    %v620 = vunpack.c.h.b16 %v349
    %v621 = vunpack.c.l.b16 %v350
    %v622 = vunpack.c.h.b16 %v350
    %v623 = vunpack.c.l.b16 %v351
    %v624 = vunpack.c.h.b16 %v351
    %v625 = vunpack.c.l.b16 %v352
    %v626 = vunpack.c.h.b16 %v352
    %v627 = vunpack.c.l.b16 %v353
    %v628 = vunpack.c.h.b16 %v353
    %v629 = vunpack.c.l.b16 %v354
    %v630 = vunpack.c.h.b16 %v354
    %v631 = vunpack.c.l.b16 %v355
    %v632 = vunpack.c.h.b16 %v355
    %v633 = vunpack.c.l.b16 %v356
    %v634 = vunpack.c.h.b16 %v356
    %v635 = vunpack.c.l.b16 %v357
    %v636 = vunpack.c.h.b16 %v357
    %v637 = vunpack.c.l.b16 %v358
    %v638 = vunpack.c.h.b16 %v358
    %v639 = vunpack.c.l.b16 %v359
    %v640 = vunpack.c.h.b16 %v359
    %v641 = vunpack.c.l.b16 %v360
    %v642 = vunpack.c.h.b16 %v360
    %v643 = vunpack.c.l.b16 %v361
    %v644 = vunpack.c.h.b16 %v361
    %v645 = vunpack.c.l.b16 %v362
    %v646 = vunpack.c.h.b16 %v362
    %v647 = vunpack.c.l.b16 %v363
    %v648 = vunpack.c.h.b16 %v363
    %v649 = vunpack.c.l.b16 %v364
    %v650 = vunpack.c.h.b16 %v364
    %v651 = vunpack.c.l.b16 %v365
    %v652 = vunpack.c.h.b16 %v365
    %v653 = vunpack.c.l.b16 %v366
    %v654 = vunpack.c.h.b16 %v366
    %v655 = vunpack.c.l.b16 %v367
    %v656 = vunpack.c.h.b16 %v367
    %v657 = vunpack.c.l.b16 %v368
    %v658 = vunpack.c.h.b16 %v368
    %v659 = vunpack.c.l.b16 %v369
    %v660 = vunpack.c.h.b16 %v369
    %v661 = vunpack.c.l.b16 %v370
    %v662 = vunpack.c.h.b16 %v370
    %v663 = vunpack.c.l.b16 %v371
    %v664 = vunpack.c.h.b16 %v371
    %v665 = vunpack.c.l.b16 %v372
    %v666 = vunpack.c.h.b16 %v372
    %v667 = vunpack.c.l.b16 %v373
    %v668 = vunpack.c.h.b16 %v373
    %v669 = vunpack.c.l.b16 %v374
    %v670 = vunpack.c.h.b16 %v374
    %v671 = vunpack.c.l.b16 %v375
    %v672 = vunpack.c.h.b16 %v375
    %v673 = vunpack.c.l.b16 %v376
    %v674 = vunpack.c.h.b16 %v376
    %v675 = vunpack.c.l.b16 %v377
    %v676 = vunpack.c.h.b16 %v377
    %v677 = vunpack.c.l.b16 %v378
    %v678 = vunpack.c.h.b16 %v378
    %v679 = vunpack.c.l.b16 %v379
    %v680 = vunpack.c.h.b16 %v379
    %v681 = vunpack.c.l.b16 %v380
    %v682 = vunpack.c.h.b16 %v380
    %v683 = vunpack.c.l.b16 %v381
    %v684 = vunpack.c.h.b16 %v381
    %v685 = vunpack.c.l.b16 %v382
    %v686 = vunpack.c.h.b16 %v382
    %v687 = vunpack.c.l.b16 %v383
    %v688 = vunpack.c.h.b16 %v383
    %v689 = vunpack.c.l.b16 %v384
    %v690 = vunpack.c.h.b16 %v384
    %v691 = vunpack.c.l.b16 %v385
    %v692 = vunpack.c.h.b16 %v385
    %v693 = vunpack.c.l.b16 %v386
    %v694 = vunpack.c.h.b16 %v386
    %v695 = vunpack.c.l.b16 %v387
    %v696 = vunpack.c.h.b16 %v387
    %v697 = vunpack.c.l.b16 %v388
    %v698 = vunpack.c.h.b16 %v388
    %v699 = vunpack.c.l.b16 %v389
    %v700 = vunpack.c.h.b16 %v389
    %v701 = vunpack.c.l.b16 %v390
    %v702 = vunpack.c.h.b16 %v390
    %v703 = vunpack.c.l.b16 %v391
    %v704 = vunpack.c.h.b16 %v391
    %v705 = vunpack.c.l.b16 %v392
    %v706 = vunpack.c.h.b16 %v392
    %v707 = vunpack.c.l.b16 %v393
    %v708 = vunpack.c.h.b16 %v393
    %v709 = vunpack.c.l.b16 %v394
    %v710 = vunpack.c.h.b16 %v394
    %v711 = vunpack.c.l.b16 %v395
    %v712 = vunpack.c.h.b16 %v395
    %v713 = vunpack.c.l.b16 %v396
    %v714 = vunpack.c.h.b16 %v396
    %v715 = vunpack.c.l.b16 %v397
    %v716 = vunpack.c.h.b16 %v397
    %v717 = vunpack.c.l.b16 %v398
    %v718 = vunpack.c.h.b16 %v398
    %v719 = vunpack.c.l.b16 %v399
    %v720 = vunpack.c.h.b16 %v399
    %v721 = vunpack.c.l.b16 %v400
    %v722 = vunpack.c.h.b16 %v400
    %v723 = vunpack.c.l.b16 %v401
    %v724 = vunpack.c.h.b16 %v401
    %v725 = vunpack.c.l.b16 %v402
    %v726 = vunpack.c.h.b16 %v402
    %v727 = vunpack.c.l.b16 %v403
    %v728 = vunpack.c.h.b16 %v403
    %v729 = vunpack.c.l.b16 %v404
    %v730 = vunpack.c.h.b16 %v404
    %v731 = vunpack.c.l.b16 %v405
    %v732 = vunpack.c.h.b16 %v405
    %v733 = vunpack.c.l.b16 %v406
    %v734 = vunpack.c.h.b16 %v406
    %v735 = vunpack.c.l.b16 %v407
    %v736 = vunpack.c.h.b16 %v407
    %v737 = vunpack.c.l.b16 %v408
    %v738 = vunpack.c.h.b16 %v408
    %v739 = vunpack.c.l.b16 %v409
    %v740 = vunpack.c.h.b16 %v409
    %v741 = vunpack.c.l.b16 %v410
    %v742 = vunpack.c.h.b16 %v410
    %v743 = vunpack.c.l.b16 %v411
    %v744 = vunpack.c.h.b16 %v411
    %v745 = vunpack.c.l.b16 %v412
    %v746 = vunpack.c.h.b16 %v412
    %v747 = vunpack.c.l.b16 %v413
    %v748 = vunpack.c.h.b16 %v413
    %v749 = vunpack.c.l.b16 %v414
    %v750 = vunpack.c.h.b16 %v414
    %v751 = vunpack.c.l.b16 %v415
    %v752 = vunpack.c.h.b16 %v415
    %v753 = vunpack.c.l.b16 %v416
    %v754 = vunpack.c.h.b16 %v416
    %v755 = vunpack.c.l.b16 %v417
    %v756 = vunpack.c.h.b16 %v417
    %v757 = vunpack.c.l.b16 %v418
    %v758 = vunpack.c.h.b16 %v418
    %v759 = vunpack.c.l.b16 %v419
    %v760 = vunpack.c.h.b16 %v419
    %v761 = vunpack.c.l.b16 %v420
    %v762 = vunpack.c.h.b16 %v420
    %v763 = vunpack.c.l.b16 %v421
    %v764 = vunpack.c.h.b16 %v421
    %v765 = vunpack.c.l.b16 %v422
    %v766 = vunpack.c.h.b16 %v422
    %v767 = vunpack.c.l.b16 %v423
    %v768 = vunpack.c.h.b16 %v423
    %v769 = vunpack.c.l.b16 %v424
    %v770 = vunpack.c.h.b16 %v424
    %v771 = vunpack.c.l.b16 %v425
    %v772 = vunpack.c.h.b16 %v425
    %v773 = vunpack.c.l.b16 %v426
    %v774 = vunpack.c.h.b16 %v426
    %v775 = vunpack.c.l.b16 %v427
    %v776 = vunpack.c.h.b16 %v427
    %v777 = vunpack.c.l.b16 %v428
    %v778 = vunpack.c.h.b16 %v428
    %v779 = vunpack.c.l.b16 %v429
    %v780 = vunpack.c.h.b16 %v429
    %v781 = vunpack.c.l.b16 %v430
    %v782 = vunpack.c.h.b16 %v430
    %v783 = vunpack.c.l.b16 %v431
    %v784 = vunpack.c.h.b16 %v431
    %v785 = vunpack.c.l.b16 %v432
    %v786 = vunpack.c.h.b16 %v432
    %v787 = vunpack.c.l.b16 %v433
    %v788 = vunpack.c.h.b16 %v433
    %v789 = vunpack.c.l.b16 %v434
    %v790 = vunpack.c.h.b16 %v434
    %v791 = vunpack.c.l.b16 %v435
    %v792 = vunpack.c.h.b16 %v435
    %v793 = vunpack.c.l.b16 %v436
    %v794 = vunpack.c.h.b16 %v436
    %v795 = vunpack.c.l.b16 %v437
    %v796 = vunpack.c.h.b16 %v437
    %v797 = vunpack.c.l.b16 %v438
    %v798 = vunpack.c.h.b16 %v438
    %v799 = vunpack.c.l.b16 %v439
    %v800 = vunpack.c.h.b16 %v439
    %v801 = vunpack.c.l.b16 %v440
    %v802 = vunpack.c.h.b16 %v440
    %v803 = vunpack.c.l.b16 %v441
    %v804 = vunpack.c.h.b16 %v441
    %v805 = vunpack.c.l.b16 %v442
    %v806 = vunpack.c.h.b16 %v442
    %v807 = vunpack.c.l.b16 %v443
    %v808 = vunpack.c.h.b16 %v443
    %v809 = vunpack.c.l.b16 %v444
    %v810 = vunpack.c.h.b16 %v444
    %v811 = vunpack.c.l.b16 %v445
    %v812 = vunpack.c.h.b16 %v445
    %v813 = vunpack.c.l.b16 %v446
    %v814 = vunpack.c.h.b16 %v446
    %v815 = vunpack.c.l.b16 %v447
    %v816 = vunpack.c.h.b16 %v447
    %v817 = vunpack.c.l.b16 %v448
    %v818 = vunpack.c.h.b16 %v448
    %v819 = vunpack.c.l.b16 %v449
    %v820 = vunpack.c.h.b16 %v449
    %v821 = vunpack.c.l.b16 %v450
    %v822 = vunpack.c.h.b16 %v450
    %v823 = vunpack.c.l.b16 %v451
    %v824 = vunpack.c.h.b16 %v451
    %v825 = vunpack.c.l.b16 %v452
    %v826 = vunpack.c.h.b16 %v452
    %v827 = vunpack.c.l.b16 %v453
    %v828 = vunpack.c.h.b16 %v453
    %v829 = vunpack.c.l.b16 %v454
    %v830 = vunpack.c.h.b16 %v454
    %v831 = vunpack.c.l.b16 %v455
    %v832 = vunpack.c.h.b16 %v455
    %v833 = vunpack.c.l.b16 %v456
    %v834 = vunpack.c.h.b16 %v456
    %v835 = vunpack.c.l.b16 %v457
    %v836 = vunpack.c.h.b16 %v457
    %v837 = vunpack.c.l.b16 %v458
    %v838 = vunpack.c.h.b16 %v458
    %v839 = vunpack.c.l.b16 %v459
    %v840 = vunpack.c.h.b16 %v459
    %v841 = vunpack.c.l.b16 %v460
    %v842 = vunpack.c.h.b16 %v460
    %v843 = vunpack.c.l.b16 %v461
    %v844 = vunpack.c.h.b16 %v461
    %v845 = vunpack.c.l.b16 %v462
    %v846 = vunpack.c.h.b16 %v462
    %v847 = vunpack.c.l.b16 %v463
    %v848 = vunpack.c.h.b16 %v463
    %v849 = vunpack.c.l.b16 %v464
    %v850 = vunpack.c.h.b16 %v464
    %v851 = vunpack.c.l.b16 %v465
    %v852 = vunpack.c.h.b16 %v465
    %v853 = vunpack.c.l.b16 %v466
    %v854 = vunpack.c.h.b16 %v466
    %v855 = vunpack.c.l.b16 %v467
    %v856 = vunpack.c.h.b16 %v467
    %v857 = vunpack.c.l.b16 %v468
    %v858 = vunpack.c.h.b16 %v468
    %v859 = vpack.c.b16 %v605, %v603
    %v860 = vpack.c.b16 %v606, %v604
    %v861 = vpack.c.b16 %v609, %v607
    %v862 = vpack.c.b16 %v610, %v608
    %v863 = vpack.c.b16 %v613, %v611
    %v864 = vpack.c.b16 %v614, %v612
    %v865 = vpack.c.b16 %v617, %v615
    %v866 = vpack.c.b16 %v618, %v616
    %v867 = vpack.c.b16 %v621, %v619
    %v868 = vpack.c.b16 %v622, %v620
    %v869 = vpack.c.b16 %v625, %v623
    %v870 = vpack.c.b16 %v626, %v624
    %v871 = vpack.c.b16 %v629, %v627
    %v872 = vpack.c.b16 %v630, %v628
    %v873 = vpack.c.b16 %v633, %v631
    %v874 = vpack.c.b16 %v634, %v632
    %v875 = vpack.c.b16 %v637, %v635
    %v876 = vpack.c.b16 %v638, %v636
    %v877 = vpack.c.b16 %v641, %v639
    %v878 = vpack.c.b16 %v642, %v640
    %v879 = vpack.c.b16 %v645, %v643
    %v880 = vpack.c.b16 %v646, %v644
    %v881 = vpack.c.b16 %v649, %v647
    %v882 = vpack.c.b16 %v650, %v648
    %v883 = vpack.c.b16 %v653, %v651
    %v884 = vpack.c.b16 %v654, %v652
    %v885 = vpack.c.b16 %v657, %v655
    %v886 = vpack.c.b16 %v658, %v656
    %v887 = vpack.c.b16 %v661, %v659
    %v888 = vpack.c.b16 %v662, %v660
    %v889 = vpack.c.b16 %v665, %v663
    %v890 = vpack.c.b16 %v666, %v664
    %v891 = vpack.c.b16 %v669, %v667
    %v892 = vpack.c.b16 %v670, %v668
    %v893 = vpack.c.b16 %v673, %v671
    %v894 = vpack.c.b16 %v674, %v672
    %v895 = vpack.c.b16 %v677, %v675
    %v896 = vpack.c.b16 %v678, %v676
    %v897 = vpack.c.b16 %v681, %v679
    %v898 = vpack.c.b16 %v682, %v680
    %v899 = vpack.c.b16 %v685, %v683
    %v900 = vpack.c.b16 %v686, %v684
    %v901 = vpack.c.b16 %v689, %v687
    %v902 = vpack.c.b16 %v690, %v688
    %v903 = vpack.c.b16 %v693, %v691
    %v904 = vpack.c.b16 %v694, %v692
    %v905 = vpack.c.b16 %v697, %v695
    %v906 = vpack.c.b16 %v698, %v696
    %v907 = vpack.c.b16 %v701, %v699
    %v908 = vpack.c.b16 %v702, %v700
    %v909 = vpack.c.b16 %v705, %v703
    %v910 = vpack.c.b16 %v706, %v704
    %v911 = vpack.c.b16 %v709, %v707
    %v912 = vpack.c.b16 %v710, %v708
    %v913 = vpack.c.b16 %v713, %v711
    %v914 = vpack.c.b16 %v714, %v712
    %v915 = vpack.c.b16 %v717, %v715
    %v916 = vpack.c.b16 %v718, %v716
    %v917 = vpack.c.b16 %v721, %v719
    %v918 = vpack.c.b16 %v722, %v720
    %v919 = vpack.c.b16 %v725, %v723
    %v920 = vpack.c.b16 %v726, %v724
    %v921 = vpack.c.b16 %v729, %v727
    %v922 = vpack.c.b16 %v730, %v728
    %v923 = vpack.c.b16 %v733, %v731
    %v924 = vpack.c.b16 %v734, %v732
    %v925 = vpack.c.b16 %v737, %v735
    %v926 = vpack.c.b16 %v738, %v736
    %v927 = vpack.c.b16 %v741, %v739
    %v928 = vpack.c.b16 %v742, %v740
    %v929 = vpack.c.b16 %v745, %v743
    %v930 = vpack.c.b16 %v746, %v744
    %v931 = vpack.c.b16 %v749, %v747
    %v932 = vpack.c.b16 %v750, %v748
    %v933 = vpack.c.b16 %v753, %v751
    %v934 = vpack.c.b16 %v754, %v752
    %v935 = vpack.c.b16 %v757, %v755
    %v936 = vpack.c.b16 %v758, %v756
    %v937 = vpack.c.b16 %v761, %v759
    %v938 = vpack.c.b16 %v762, %v760
    %v939 = vpack.c.b16 %v765, %v763
    %v940 = vpack.c.b16 %v766, %v764
    %v941 = vpack.c.b16 %v769, %v767
    %v942 = vpack.c.b16 %v770, %v768
    %v943 = vpack.c.b16 %v773, %v771
    %v944 = vpack.c.b16 %v774, %v772
    %v945 = vpack.c.b16 %v777, %v775
    %v946 = vpack.c.b16 %v778, %v776
    %v947 = vpack.c.b16 %v781, %v779
    %v948 = vpack.c.b16 %v782, %v780
    %v949 = vpack.c.b16 %v785, %v783
    %v950 = vpack.c.b16 %v786, %v784
    %v951 = vpack.c.b16 %v789, %v787
    %v952 = vpack.c.b16 %v790, %v788
    %v953 = vpack.c.b16 %v793, %v791
    %v954 = vpack.c.b16 %v794, %v792
    %v955 = vpack.c.b16 %v797, %v795
    %v956 = vpack.c.b16 %v798, %v796
    %v957 = vpack.c.b16 %v801, %v799
    %v958 = vpack.c.b16 %v802, %v800
    %v959 = vpack.c.b16 %v805, %v803
    %v960 = vpack.c.b16 %v806, %v804
    %v961 = vpack.c.b16 %v809, %v807
    %v962 = vpack.c.b16 %v810, %v808
    %v963 = vpack.c.b16 %v813, %v811
    %v964 = vpack.c.b16 %v814, %v812
    %v965 = vpack.c.b16 %v817, %v815
    %v966 = vpack.c.b16 %v818, %v816
    %v967 = vpack.c.b16 %v821, %v819
    %v968 = vpack.c.b16 %v822, %v820
    %v969 = vpack.c.b16 %v825, %v823
    %v970 = vpack.c.b16 %v826, %v824
    %v971 = vpack.c.b16 %v829, %v827
    %v972 = vpack.c.b16 %v830, %v828
    %v973 = vpack.c.b16 %v833, %v831
    %v974 = vpack.c.b16 %v834, %v832
    %v975 = vpack.c.b16 %v837, %v835
    %v976 = vpack.c.b16 %v838, %v836
    %v977 = vpack.c.b16 %v841, %v839
    %v978 = vpack.c.b16 %v842, %v840
    %v979 = vpack.c.b16 %v845, %v843
    %v980 = vpack.c.b16 %v846, %v844
    %v981 = vpack.c.b16 %v849, %v847
    %v982 = vpack.c.b16 %v850, %v848
    %v983 = vpack.c.b16 %v853, %v851
    %v984 = vpack.c.b16 %v854, %v852
    %v985 = vpack.c.b16 %v857, %v855
    %v986 = vpack.c.b16 %v858, %v856
    %1115 = vmatpush.bf16.msra.mxu0 %v873
    %1116 = vmatpush.bf16.msra.mxu0 %v871
    %1117 = vmatpush.bf16.msra.mxu0 %v869
    %1118 = vmatpush.bf16.msra.mxu0 %v867
    %1119 = vmatpush.bf16.msra.mxu0 %v865
    %1120 = vmatpush.bf16.msra.mxu0 %v863
    %1121 = vmatpush.bf16.msra.mxu0 %v861
    %1122 = vmatpush.bf16.msra.mxu0 %v859
    %1123 = vmatmul.bf16.gmra.mxu0 %v333
    %v1124 = vpop.f32.mrf.mxu0
    %v1125 = vadd.f32 %v471, %v1124
    %v1126 = vpop.f32.mrf.mxu0
    %1127 = vdwg.mxu0
    %1128 = vmatpush.bf16.msra.mxu0 %v889
    %1129 = vmatpush.bf16.msra.mxu0 %v887
    %1130 = vmatpush.bf16.msra.mxu0 %v885
    %1131 = vmatpush.bf16.msra.mxu0 %v883
    %1132 = vmatpush.bf16.msra.mxu0 %v881
    %1133 = vmatpush.bf16.msra.mxu0 %v879
    %1134 = vmatpush.bf16.msra.mxu0 %v877
    %1135 = vmatpush.bf16.msra.mxu0 %v875
    %1136 = vmatmul.bf16.gmra.mxu0 %v334
    %v1137 = vpop.f32.mrf.mxu0
    %v1138 = vadd.f32 %v1125, %v1137
    %v1139 = vpop.f32.mrf.mxu0
    %1140 = vdwg.mxu0
    %1141 = vmatpush.bf16.msra.mxu0 %v905
    %1142 = vmatpush.bf16.msra.mxu0 %v903
    %1143 = vmatpush.bf16.msra.mxu0 %v901
    %1144 = vmatpush.bf16.msra.mxu0 %v899
    %1145 = vmatpush.bf16.msra.mxu0 %v897
    %1146 = vmatpush.bf16.msra.mxu0 %v895
    %1147 = vmatpush.bf16.msra.mxu0 %v893
    %1148 = vmatpush.bf16.msra.mxu0 %v891
    %1149 = vmatmul.bf16.gmra.mxu0 %v335
    %v1150 = vpop.f32.mrf.mxu0
    %v1151 = vadd.f32 %v1138, %v1150
    %v1152 = vpop.f32.mrf.mxu0
    %1153 = vdwg.mxu0
    %1154 = vmatpush.bf16.msra.mxu0 %v921
    %1155 = vmatpush.bf16.msra.mxu0 %v919
    %1156 = vmatpush.bf16.msra.mxu0 %v917
    %1157 = vmatpush.bf16.msra.mxu0 %v915
    %1158 = vmatpush.bf16.msra.mxu0 %v913
    %1159 = vmatpush.bf16.msra.mxu0 %v911
    %1160 = vmatpush.bf16.msra.mxu0 %v909
    %1161 = vmatpush.bf16.msra.mxu0 %v907
    %1162 = vmatmul.bf16.gmra.mxu0 %v336
    %v1163 = vpop.f32.mrf.mxu0
    %v1164 = vadd.f32 %v1151, %v1163
    %v1165 = vpop.f32.mrf.mxu0
    %1166 = vdwg.mxu0
    %1167 = vmatpush.bf16.msra.mxu0 %v937
    %1168 = vmatpush.bf16.msra.mxu0 %v935
    %1169 = vmatpush.bf16.msra.mxu0 %v933
    %1170 = vmatpush.bf16.msra.mxu0 %v931
    %1171 = vmatpush.bf16.msra.mxu0 %v929
    %1172 = vmatpush.bf16.msra.mxu0 %v927
    %1173 = vmatpush.bf16.msra.mxu0 %v925
    %1174 = vmatpush.bf16.msra.mxu0 %v923
    %1175 = vmatmul.bf16.gmra.mxu0 %v337
    %v1176 = vpop.f32.mrf.mxu0
    %v1177 = vadd.f32 %v1164, %v1176
    %v1178 = vpop.f32.mrf.mxu0
    %1179 = vdwg.mxu0
    %1180 = vmatpush.bf16.msra.mxu0 %v953
    %1181 = vmatpush.bf16.msra.mxu0 %v951
    %1182 = vmatpush.bf16.msra.mxu0 %v949
    %1183 = vmatpush.bf16.msra.mxu0 %v947
    %1184 = vmatpush.bf16.msra.mxu0 %v945
    %1185 = vmatpush.bf16.msra.mxu0 %v943
    %1186 = vmatpush.bf16.msra.mxu0 %v941
    %1187 = vmatpush.bf16.msra.mxu0 %v939
    %1188 = vmatmul.bf16.gmra.mxu0 %v338
    %v1189 = vpop.f32.mrf.mxu0
    %v1190 = vadd.f32 %v1177, %v1189
    %v1191 = vpop.f32.mrf.mxu0
    %1192 = vdwg.mxu0
    %1193 = vmatpush.bf16.msra.mxu0 %v969
    %1194 = vmatpush.bf16.msra.mxu0 %v967
    %1195 = vmatpush.bf16.msra.mxu0 %v965
    %1196 = vmatpush.bf16.msra.mxu0 %v963
    %1197 = vmatpush.bf16.msra.mxu0 %v961
    %1198 = vmatpush.bf16.msra.mxu0 %v959
    %1199 = vmatpush.bf16.msra.mxu0 %v957
    %1200 = vmatpush.bf16.msra.mxu0 %v955
    %1201 = vmatmul.bf16.gmra.mxu0 %v339
    %v1202 = vpop.f32.mrf.mxu0
    %v1203 = vadd.f32 %v1190, %v1202
    %v1204 = vpop.f32.mrf.mxu0
    %1205 = vdwg.mxu0
    %1206 = vmatpush.bf16.msra.mxu0 %v985
    %1207 = vmatpush.bf16.msra.mxu0 %v983
    %1208 = vmatpush.bf16.msra.mxu0 %v981
    %1209 = vmatpush.bf16.msra.mxu0 %v979
    %1210 = vmatpush.bf16.msra.mxu0 %v977
    %1211 = vmatpush.bf16.msra.mxu0 %v975
    %1212 = vmatpush.bf16.msra.mxu0 %v973
    %1213 = vmatpush.bf16.msra.mxu0 %v971
    %1214 = vmatmul.bf16.gmra.mxu0 %v340
    %v1215 = vpop.f32.mrf.mxu0
    %v1216 = vadd.f32 %v1203, %v1215
    %v1217 = vpop.f32.mrf.mxu0
    %1218 = vdwg.mxu0
    %1219 = vmatpush.bf16.msra.mxu0 %v874
    %1220 = vmatpush.bf16.msra.mxu0 %v872
    %1221 = vmatpush.bf16.msra.mxu0 %v870
    %1222 = vmatpush.bf16.msra.mxu0 %v868
    %1223 = vmatpush.bf16.msra.mxu0 %v866
    %1224 = vmatpush.bf16.msra.mxu0 %v864
    %1225 = vmatpush.bf16.msra.mxu0 %v862
    %1226 = vmatpush.bf16.msra.mxu0 %v860
    %1227 = vmatmul.bf16.gmra.mxu0 %v333
    %v1228 = vpop.f32.mrf.mxu0
    %v1229 = vadd.f32 %v472, %v1228
    %v1230 = vpop.f32.mrf.mxu0
    %1231 = vdwg.mxu0
    %1232 = vmatpush.bf16.msra.mxu0 %v890
    %1233 = vmatpush.bf16.msra.mxu0 %v888
    %1234 = vmatpush.bf16.msra.mxu0 %v886
    %1235 = vmatpush.bf16.msra.mxu0 %v884
    %1236 = vmatpush.bf16.msra.mxu0 %v882
    %1237 = vmatpush.bf16.msra.mxu0 %v880
    %1238 = vmatpush.bf16.msra.mxu0 %v878
    %1239 = vmatpush.bf16.msra.mxu0 %v876
    %1240 = vmatmul.bf16.gmra.mxu0 %v334
    %v1241 = vpop.f32.mrf.mxu0
    %v1242 = vadd.f32 %v1229, %v1241
    %v1243 = vpop.f32.mrf.mxu0
    %1244 = vdwg.mxu0
    %1245 = vmatpush.bf16.msra.mxu0 %v906
    %1246 = vmatpush.bf16.msra.mxu0 %v904
    %1247 = vmatpush.bf16.msra.mxu0 %v902
    %1248 = vmatpush.bf16.msra.mxu0 %v900
    %1249 = vmatpush.bf16.msra.mxu0 %v898
    %1250 = vmatpush.bf16.msra.mxu0 %v896
    %1251 = vmatpush.bf16.msra.mxu0 %v894
    %1252 = vmatpush.bf16.msra.mxu0 %v892
    %1253 = vmatmul.bf16.gmra.mxu0 %v335
    %v1254 = vpop.f32.mrf.mxu0
    %v1255 = vadd.f32 %v1242, %v1254
    %v1256 = vpop.f32.mrf.mxu0
    %1257 = vdwg.mxu0
    %1258 = vmatpush.bf16.msra.mxu0 %v922
    %1259 = vmatpush.bf16.msra.mxu0 %v920
    %1260 = vmatpush.bf16.msra.mxu0 %v918
    %1261 = vmatpush.bf16.msra.mxu0 %v916
    %1262 = vmatpush.bf16.msra.mxu0 %v914
    %1263 = vmatpush.bf16.msra.mxu0 %v912
    %1264 = vmatpush.bf16.msra.mxu0 %v910
    %1265 = vmatpush.bf16.msra.mxu0 %v908
    %1266 = vmatmul.bf16.gmra.mxu0 %v336
    %v1267 = vpop.f32.mrf.mxu0
    %v1268 = vadd.f32 %v1255, %v1267
    %v1269 = vpop.f32.mrf.mxu0
    %1270 = vdwg.mxu0
    %1271 = vmatpush.bf16.msra.mxu0 %v938
    %1272 = vmatpush.bf16.msra.mxu0 %v936
    %1273 = vmatpush.bf16.msra.mxu0 %v934
    %1274 = vmatpush.bf16.msra.mxu0 %v932
    %1275 = vmatpush.bf16.msra.mxu0 %v930
    %1276 = vmatpush.bf16.msra.mxu0 %v928
    %1277 = vmatpush.bf16.msra.mxu0 %v926
    %1278 = vmatpush.bf16.msra.mxu0 %v924
    %1279 = vmatmul.bf16.gmra.mxu0 %v337
    %v1280 = vpop.f32.mrf.mxu0
    %v1281 = vadd.f32 %v1268, %v1280
    %v1282 = vpop.f32.mrf.mxu0
    %1283 = vdwg.mxu0
    %1284 = vmatpush.bf16.msra.mxu0 %v954
    %1285 = vmatpush.bf16.msra.mxu0 %v952
    %1286 = vmatpush.bf16.msra.mxu0 %v950
    %1287 = vmatpush.bf16.msra.mxu0 %v948
    %1288 = vmatpush.bf16.msra.mxu0 %v946
    %1289 = vmatpush.bf16.msra.mxu0 %v944
    %1290 = vmatpush.bf16.msra.mxu0 %v942
    %1291 = vmatpush.bf16.msra.mxu0 %v940
    %1292 = vmatmul.bf16.gmra.mxu0 %v338
    %v1293 = vpop.f32.mrf.mxu0
    %v1294 = vadd.f32 %v1281, %v1293
    %v1295 = vpop.f32.mrf.mxu0
    %1296 = vdwg.mxu0
    %1297 = vmatpush.bf16.msra.mxu0 %v970
    %1298 = vmatpush.bf16.msra.mxu0 %v968
    %1299 = vmatpush.bf16.msra.mxu0 %v966
    %1300 = vmatpush.bf16.msra.mxu0 %v964
    %1301 = vmatpush.bf16.msra.mxu0 %v962
    %1302 = vmatpush.bf16.msra.mxu0 %v960
    %1303 = vmatpush.bf16.msra.mxu0 %v958
    %1304 = vmatpush.bf16.msra.mxu0 %v956
    %1305 = vmatmul.bf16.gmra.mxu0 %v339
    %v1306 = vpop.f32.mrf.mxu0
    %v1307 = vadd.f32 %v1294, %v1306
    %v1308 = vpop.f32.mrf.mxu0
    %1309 = vdwg.mxu0
    %1310 = vmatpush.bf16.msra.mxu0 %v986
    %1311 = vmatpush.bf16.msra.mxu0 %v984
    %1312 = vmatpush.bf16.msra.mxu0 %v982
    %1313 = vmatpush.bf16.msra.mxu0 %v980
    %1314 = vmatpush.bf16.msra.mxu0 %v978
    %1315 = vmatpush.bf16.msra.mxu0 %v976
    %1316 = vmatpush.bf16.msra.mxu0 %v974
    %1317 = vmatpush.bf16.msra.mxu0 %v972
    %1318 = vmatmul.bf16.gmra.mxu0 %v340
    %v1319 = vpop.f32.mrf.mxu0
    %v1320 = vadd.f32 %v1307, %v1319
    %v1321 = vpop.f32.mrf.mxu0
    %1322 = vdwg.mxu0
    %v1323 = vmax.f32 %v1216, 0.0
    %v1324 = vmax.f32 %v1320, 0.0
    %v1325 = vpack.c.bf16 %v1323, %v1323
    %v1326 = vpack.c.bf16 %v1324, %v1324
    %v1327 = vld [vmem:[#allocation10] sm:$0xf]
    %v1328 = vld [vmem:[#allocation10 + $0x4] sm:$0xf]
    %v1329 = vld [vmem:[#allocation10 + $0x8] sm:$0xf]
    %v1330 = vld [vmem:[#allocation10 + $0xc] sm:$0xf]
    %v1331 = vld [vmem:[#allocation10 + $0x10] sm:$0xf]
    %v1332 = vld [vmem:[#allocation10 + $0x14] sm:$0xf]
    %v1333 = vld [vmem:[#allocation10 + $0x18] sm:$0xf]
    %v1334 = vld [vmem:[#allocation10 + $0x1c] sm:$0xf]
    %v1335 = vld [vmem:[#allocation10 + $0x20] sm:$0xf]
    %v1336 = vld [vmem:[#allocation10 + $0x24] sm:$0xf]
    %v1337 = vld [vmem:[#allocation10 + $0x28] sm:$0xf]
    %v1338 = vld [vmem:[#allocation10 + $0x2c] sm:$0xf]
    %v1339 = vld [vmem:[#allocation10 + $0x30] sm:$0xf]
    %v1340 = vld [vmem:[#allocation10 + $0x34] sm:$0xf]
    %v1341 = vld [vmem:[#allocation10 + $0x38] sm:$0xf]
    %v1342 = vld [vmem:[#allocation10 + $0x3c] sm:$0xf]
    %v1343 = vld [vmem:[#allocation10 + $0x40] sm:$0xf]
    %v1344 = vld [vmem:[#allocation10 + $0x44] sm:$0xf]
    %v1345 = vld [vmem:[#allocation10 + $0x48] sm:$0xf]
    %v1346 = vld [vmem:[#allocation10 + $0x4c] sm:$0xf]
    %v1347 = vld [vmem:[#allocation10 + $0x50] sm:$0xf]
    %v1348 = vld [vmem:[#allocation10 + $0x54] sm:$0xf]
    %v1349 = vld [vmem:[#allocation10 + $0x58] sm:$0xf]
    %v1350 = vld [vmem:[#allocation10 + $0x5c] sm:$0xf]
    %v1351 = vld [vmem:[#allocation10 + $0x60] sm:$0xf]
    %v1352 = vld [vmem:[#allocation10 + $0x64] sm:$0xf]
    %v1353 = vld [vmem:[#allocation10 + $0x68] sm:$0xf]
    %v1354 = vld [vmem:[#allocation10 + $0x6c] sm:$0xf]
    %v1355 = vld [vmem:[#allocation10 + $0x70] sm:$0xf]
    %v1356 = vld [vmem:[#allocation10 + $0x74] sm:$0xf]
    %v1357 = vld [vmem:[#allocation10 + $0x78] sm:$0xf]
    %v1358 = vld [vmem:[#allocation10 + $0x7c] sm:$0xf]
    %v1359 = vld [vmem:[%s6] sm:$0x1]
    %v1361 = vperm.slane %v1359, 0
    %v1395 = vunpack.c.l.b16 %v1327
    %v1396 = vunpack.c.l.b16 %v1328
    %v1397 = vunpack.c.l.b16 %v1329
    %v1398 = vunpack.c.l.b16 %v1330
    %v1399 = vunpack.c.l.b16 %v1331
    %v1400 = vunpack.c.l.b16 %v1332
    %v1401 = vunpack.c.l.b16 %v1333
    %v1402 = vunpack.c.l.b16 %v1334
    %v1403 = vunpack.c.l.b16 %v1335
    %v1404 = vunpack.c.l.b16 %v1336
    %v1405 = vunpack.c.l.b16 %v1337
    %v1406 = vunpack.c.l.b16 %v1338
    %v1407 = vunpack.c.l.b16 %v1339
    %v1408 = vunpack.c.l.b16 %v1340
    %v1409 = vunpack.c.l.b16 %v1341
    %v1410 = vunpack.c.l.b16 %v1342
    %v1411 = vunpack.c.l.b16 %v1343
    %v1412 = vunpack.c.l.b16 %v1344
    %v1413 = vunpack.c.l.b16 %v1345
    %v1414 = vunpack.c.l.b16 %v1346
    %v1415 = vunpack.c.l.b16 %v1347
    %v1416 = vunpack.c.l.b16 %v1348
    %v1417 = vunpack.c.l.b16 %v1349
    %v1418 = vunpack.c.l.b16 %v1350
    %v1419 = vunpack.c.l.b16 %v1351
    %v1420 = vunpack.c.l.b16 %v1352
    %v1421 = vunpack.c.l.b16 %v1353
    %v1422 = vunpack.c.l.b16 %v1354
    %v1423 = vunpack.c.l.b16 %v1355
    %v1424 = vunpack.c.l.b16 %v1356
    %v1425 = vunpack.c.l.b16 %v1357
    %v1426 = vunpack.c.l.b16 %v1358
    %v1427 = vpack.c.b16 %v1396, %v1395
    %v1428 = vpack.c.b16 %v1398, %v1397
    %v1429 = vpack.c.b16 %v1400, %v1399
    %v1430 = vpack.c.b16 %v1402, %v1401
    %v1431 = vpack.c.b16 %v1404, %v1403
    %v1432 = vpack.c.b16 %v1406, %v1405
    %v1433 = vpack.c.b16 %v1408, %v1407
    %v1434 = vpack.c.b16 %v1410, %v1409
    %v1435 = vpack.c.b16 %v1412, %v1411
    %v1436 = vpack.c.b16 %v1414, %v1413
    %v1437 = vpack.c.b16 %v1416, %v1415
    %v1438 = vpack.c.b16 %v1418, %v1417
    %v1439 = vpack.c.b16 %v1420, %v1419
    %v1440 = vpack.c.b16 %v1422, %v1421
    %v1441 = vpack.c.b16 %v1424, %v1423
    %v1442 = vpack.c.b16 %v1426, %v1425
    %1459 = vmatpush.bf16.msra.mxu0 %v1434
    %1460 = vmatpush.bf16.msra.mxu0 %v1433
    %1461 = vmatpush.bf16.msra.mxu0 %v1432
    %1462 = vmatpush.bf16.msra.mxu0 %v1431
    %1463 = vmatpush.bf16.msra.mxu0 %v1430
    %1464 = vmatpush.bf16.msra.mxu0 %v1429
    %1465 = vmatpush.bf16.msra.mxu0 %v1428
    %1466 = vmatpush.bf16.msra.mxu0 %v1427
    %1467 = vmatmul.bf16.gmra.mxu0 %v1325
    %v1468 = vpop.f32.mrf.mxu0
    %v1469 = vadd.f32 %v1361, %v1468
    %v1470 = vpop.f32.mrf.mxu0
    %1471 = vdwg.mxu0
    %1472 = vmatpush.bf16.msra.mxu0 %v1442
    %1473 = vmatpush.bf16.msra.mxu0 %v1441
    %1474 = vmatpush.bf16.msra.mxu0 %v1440
    %1475 = vmatpush.bf16.msra.mxu0 %v1439
    %1476 = vmatpush.bf16.msra.mxu0 %v1438
    %1477 = vmatpush.bf16.msra.mxu0 %v1437
    %1478 = vmatpush.bf16.msra.mxu0 %v1436
    %1479 = vmatpush.bf16.msra.mxu0 %v1435
    %1480 = vmatmul.bf16.gmra.mxu0 %v1326
    %v1481 = vpop.f32.mrf.mxu0
    %v1482 = vadd.f32 %v1469, %v1481
    %v1483 = vpop.f32.mrf.mxu0
    %1484 = vdwg.mxu0
    %1485 = vst [vmem:[#allocation11] sm:$0xff] %v1482
    // Predicated region
    $region50: #{tpu_custom_call.1} parent=1 // pred_check
      _
    $region51: #{tpu_custom_call.1} parent=1 // pred_check_branch
      %1487 = sbr.rel (0) target = $region53
    $region52: #{tpu_custom_call.1} parent=1 // pred_region
      %1489 = vsyncadd [#allocation4], 0
      %s1491 = sshll.u32 [#allocation11], 4
      %s1492 = int_to_ptr.vmem [resolvable:$true] %s1491
      %s1493 = sshll.u32 %s7, 4
      %s1494 = int_to_ptr.hbm [resolvable:$true] %s1493
      %1496 = dma.vmem_to_hbm [thread:$0]  %s1492, 128, %s1494, [#allocation4]
    $region53: #{tpu_custom_call.1} parent=1 // pred_fallthru
      _
    // Predicated region
    $region54: #{tpu_custom_call.1} parent=1 // pred_check
      _
    $region55: #{tpu_custom_call.1} parent=1 // pred_check_branch
      %1498 = sbr.rel (0) target = $region57
    $region56: #{tpu_custom_call.1} parent=1 // pred_region
      %1500 = dma.done [#allocation4], 128
    $region57: #{tpu_custom_call.1} parent=1 // pred_fallthru
      _
    %1501 = vsyncpa [#allocation3], 1
    %1502 = vsyncpa [#allocation6], 1
    %1503 = vsyncpa [#allocation9], 1
    %1504 = vsyncpa [#allocation4], 1

// kernel: tpu_custom_call.1
$region0: #{tpu_custom_call.1}
  #allocation0 [shape = 'u32[]', space=smem, size = 0x4, offset = 0x4, fixed_abs, tag = 'smem constant byte address 0x4 - core index']
  #allocation1 [shape = 'u32[72,128]{1,0:T(1,128)}', space=vmem, size = 0x9000, scoped, tag = 'internal scratch']
  %s0 = inlined_call_operand.hbm [shape: bf16[8,32], index: 0, kind: input, shape index: {}]
  %s1 = inlined_call_operand.hbm [shape: bf16[32,1024], index: 1, kind: input, shape index: {}]
  %s2 = inlined_call_operand.hbm [shape: f32[1,1024], index: 2, kind: input, shape index: {}]
  %s3 = inlined_call_operand.hbm [shape: bf16[1024,256], index: 3, kind: input, shape index: {}]
  %s4 = inlined_call_operand.vmem [shape: f32[1,256], index: 4, kind: input, shape index: {}]
  %s5 = inlined_call_operand.hbm [shape: bf16[256,128], index: 5, kind: input, shape index: {}]
  %s6 = inlined_call_operand.vmem [shape: f32[1,128], index: 6, kind: input, shape index: {}]
  %s7 = inlined_call_operand.hbm [shape: f32[8,128], index: 7, kind: output, shape index: {}]
  %s8 = sld [smem:[#allocation0]]
  $region58: #{tpu_custom_call.1} parent=0
    _
  %s10 = ssub.s32 1, %s8
  %s11 = scalar_select 0, %s10, %s8
  $region1: #{tpu_custom_call.1} parent=0
    #allocation2 [shape = 'u8[2048]{0}', space=vmem, size = 0x800, scoped, tag = 'input window, operand 0, single buffered']
    #allocation3 [shape = 's32[1]{0}', space=sflag, size = 0x4, scoped, tag = 'scoped memory for tpu_custom_call.1']
    #allocation4 [shape = 's32[1]{0}', space=sflag, size = 0x4, scoped, tag = 'scoped memory for tpu_custom_call.1']
    #allocation5 [shape = 'u8[65536]{0}', space=vmem, size = 0x10000, scoped, tag = 'input window, operand 1, single buffered']
    #allocation6 [shape = 's32[1]{0}', space=sflag, size = 0x4, scoped, tag = 'scoped memory for tpu_custom_call.1']
    #allocation7 [shape = 'u8[4096]{0}', space=vmem, size = 0x1000, scoped, tag = 'input window, operand 2, single buffered']
    #allocation8 [shape = 'u8[524288]{0}', space=vmem, size = 0x80000, scoped, tag = 'input window, operand 3, single buffered']
    #allocation9 [shape = 's32[1]{0}', space=sflag, size = 0x4, scoped, tag = 'scoped memory for tpu_custom_call.1']
    #allocation10 [shape = 'u8[65536]{0}', space=vmem, size = 0x10000, scoped, tag = 'input window, operand 5, single buffered']
    #allocation11 [shape = 'u8[4096]{0}', space=vmem, size = 0x1000, scoped, tag = 'output window, operand 0, single buffered']
    %12 = vsyncpa [#allocation3], 0
    %13 = vsyncpa [#allocation6], 0
    %14 = vsyncpa [#allocation9], 0
    %15 = vsyncpa [#allocation4], 0
    // Predicated region
    $region2: #{tpu_custom_call.1} parent=1 // pred_check
      _
    $region3: #{tpu_custom_call.1} parent=1 // pred_check_branch
      %17 = sbr.rel (0) target = $region5
    $region4: #{tpu_custom_call.1} parent=1 // pred_region
      %19 = vsyncadd [#allocation3], 0
      %s21 = sshll.u32 %s0, 4
      %s22 = int_to_ptr.hbm [resolvable:$true] %s21
      %s23 = sshll.u32 [#allocation2], 4
      %s24 = int_to_ptr.vmem [resolvable:$true] %s23
      %26 = dma.hbm_to_vmem [thread:$0]  %s22, 64, %s24, [#allocation3]
    $region5: #{tpu_custom_call.1} parent=1 // pred_fallthru
      _
    // Predicated region
    $region6: #{tpu_custom_call.1} parent=1 // pred_check
      _
    $region7: #{tpu_custom_call.1} parent=1 // pred_check_branch
      %28 = sbr.rel (0) target = $region9
    $region8: #{tpu_custom_call.1} parent=1 // pred_region
      %30 = vsyncadd [#allocation6], 0
      %s31 = sshll.u32 %s1, 4
      %s32 = int_to_ptr.hbm [resolvable:$true] %s31
      %s33 = sshll.u32 [#allocation5], 4
      %s34 = int_to_ptr.vmem [resolvable:$true] %s33
      %39 = dma.hbm_to_vmem [thread:$0]  %s32, 2048, %s34, [#allocation6], 512, 512, 32
    $region9: #{tpu_custom_call.1} parent=1 // pred_fallthru
      _
    // Predicated region
    $region10: #{tpu_custom_call.1} parent=1 // pred_check
      _
    $region11: #{tpu_custom_call.1} parent=1 // pred_check_branch
      %41 = sbr.rel (0) target = $region13
    $region12: #{tpu_custom_call.1} parent=1 // pred_region
      %43 = vsyncadd [#allocation6], 0
      %s45 = sshll.u32 %s2, 4
      %s46 = int_to_ptr.hbm [resolvable:$true] %s45
      %s47 = sshll.u32 [#allocation7], 4
      %s48 = int_to_ptr.vmem [resolvable:$true] %s47
      %50 = dma.hbm_to_vmem [thread:$0]  %s46, 128, %s48, [#allocation6]
    $region13: #{tpu_custom_call.1} parent=1 // pred_fallthru
      _
    // Predicated region
    $region14: #{tpu_custom_call.1} parent=1 // pred_check
      _
    $region15: #{tpu_custom_call.1} parent=1 // pred_check_branch
      %52 = sbr.rel (0) target = $region17
    $region16: #{tpu_custom_call.1} parent=1 // pred_region
      %54 = vsyncadd [#allocation9], 0
      %s55 = sshll.u32 %s3, 4
      %s56 = int_to_ptr.hbm [resolvable:$true] %s55
      %s57 = sshll.u32 [#allocation8], 4
      %s58 = int_to_ptr.vmem [resolvable:$true] %s57
      %63 = dma.hbm_to_vmem [thread:$0]  %s56, 16384, %s58, [#allocation9], 128, 128, 8
    $region17: #{tpu_custom_call.1} parent=1 // pred_fallthru
      _
    // Predicated region
    $region18: #{tpu_custom_call.1} parent=1 // pred_check
      _
    $region19: #{tpu_custom_call.1} parent=1 // pred_check_branch
      %65 = sbr.rel (0) target = $region21
    $region20: #{tpu_custom_call.1} parent=1 // pred_region
      _
    $region21: #{tpu_custom_call.1} parent=1 // pred_fallthru
      _
    // Predicated region
    $region22: #{tpu_custom_call.1} parent=1 // pred_check
      _
    $region23: #{tpu_custom_call.1} parent=1 // pred_check_branch
      %67 = sbr.rel (0) target = $region25
    $region24: #{tpu_custom_call.1} parent=1 // pred_region
      %69 = vsyncadd [#allocation9], 0
      %s70 = sshll.u32 %s5, 4
      %s71 = int_to_ptr.hbm [resolvable:$true] %s70
      %s72 = sshll.u32 [#allocation10], 4
      %s73 = int_to_ptr.vmem [resolvable:$true] %s72
      %78 = dma.hbm_to_vmem [thread:$0]  %s71, 2048, %s73, [#allocation9], 64, 64, 4
    $region25: #{tpu_custom_call.1} parent=1 // pred_fallthru
      _
    // Predicated region
    $region26: #{tpu_custom_call.1} parent=1 // pred_check
      _
    $region27: #{tpu_custom_call.1} parent=1 // pred_check_branch
      %80 = sbr.rel (0) target = $region29
    $region28: #{tpu_custom_call.1} parent=1 // pred_region
      _
    $region29: #{tpu_custom_call.1} parent=1 // pred_fallthru
      _
    // Predicated region
    $region30: #{tpu_custom_call.1} parent=1 // pred_check
      _
    $region31: #{tpu_custom_call.1} parent=1 // pred_check_branch
      %82 = sbr.rel (0) target = $region33
    $region32: #{tpu_custom_call.1} parent=1 // pred_region
      %84 = dma.done [#allocation3], 64
    $region33: #{tpu_custom_call.1} parent=1 // pred_fallthru
      _
    // Predicated region
    $region34: #{tpu_custom_call.1} parent=1 // pred_check
      _
    $region35: #{tpu_custom_call.1} parent=1 // pred_check_branch
      %86 = sbr.rel (0) target = $region37
    $region36: #{tpu_custom_call.1} parent=1 // pred_region
      %88 = dma.done [#allocation6], 2048
    $region37: #{tpu_custom_call.1} parent=1 // pred_fallthru
      _
    // Predicated region
    $region38: #{tpu_custom_call.1} parent=1 // pred_check
      _
    $region39: #{tpu_custom_call.1} parent=1 // pred_check_branch
      %90 = sbr.rel (0) target = $region41
    $region40: #{tpu_custom_call.1} parent=1 // pred_region
      %92 = dma.done [#allocation6], 128
    $region41: #{tpu_custom_call.1} parent=1 // pred_fallthru
      _
    // Predicated region
    $region42: #{tpu_custom_call.1} parent=1 // pred_check
      _
    $region43: #{tpu_custom_call.1} parent=1 // pred_check_branch
      %94 = sbr.rel (0) target = $region45
    $region44: #{tpu_custom_call.1} parent=1 // pred_region
      %96 = dma.done [#allocation9], 16384
    $region45: #{tpu_custom_call.1} parent=1 // pred_fallthru
      _
    // Predicated region
    $region46: #{tpu_custom_call.1} parent=1 // pred_check
      _
    $region47: #{tpu_custom_call.1} parent=1 // pred_check_branch
      %98 = sbr.rel (0) target = $region49
    $region48: #{tpu_custom_call.1} parent=1 // pred_region
      %100 = dma.done [#allocation9], 2048
    $region49: #{tpu_custom_call.1} parent=1 // pred_fallthru
      _
    %v102 = vld [vmem:[#allocation2] sm:$0xf]
    %v103 = vld [vmem:[#allocation5] sm:$0xff]
    %v104 = vld [vmem:[#allocation5 + $0x8] sm:$0xff]
    %v105 = vld [vmem:[#allocation5 + $0x10] sm:$0xff]
    %v106 = vld [vmem:[#allocation5 + $0x18] sm:$0xff]
    %v107 = vld [vmem:[#allocation5 + $0x20] sm:$0xff]
    %v108 = vld [vmem:[#allocation5 + $0x28] sm:$0xff]
    %v109 = vld [vmem:[#allocation5 + $0x30] sm:$0xff]
    %v110 = vld [vmem:[#allocation5 + $0x38] sm:$0xff]
    %v111 = vld [vmem:[#allocation5 + $0x40] sm:$0xff]
    %v112 = vld [vmem:[#allocation5 + $0x48] sm:$0xff]
    %v113 = vld [vmem:[#allocation5 + $0x50] sm:$0xff]
    %v114 = vld [vmem:[#allocation5 + $0x58] sm:$0xff]
    %v115 = vld [vmem:[#allocation5 + $0x60] sm:$0xff]
    %v116 = vld [vmem:[#allocation5 + $0x68] sm:$0xff]
    %v117 = vld [vmem:[#allocation5 + $0x70] sm:$0xff]
    %v118 = vld [vmem:[#allocation5 + $0x78] sm:$0xff]
    %v119 = vld [vmem:[#allocation7] sm:$0xff]
    %v121 = vperm.slane %v119, 0
    %v122 = vperm.slane %v119, 1
    %v123 = vperm.slane %v119, 2
    %v124 = vperm.slane %v119, 3
    %v125 = vperm.slane %v119, 4
    %v126 = vperm.slane %v119, 5
    %v127 = vperm.slane %v119, 6
    %v128 = vperm.slane %v119, 7
    %v153 = vunpack.c.l.b16 %v103
    %v154 = vunpack.c.h.b16 %v103
    %v155 = vunpack.c.l.b16 %v104
    %v156 = vunpack.c.h.b16 %v104
    %v157 = vunpack.c.l.b16 %v105
    %v158 = vunpack.c.h.b16 %v105
    %v159 = vunpack.c.l.b16 %v106
    %v160 = vunpack.c.h.b16 %v106
    %v161 = vunpack.c.l.b16 %v107
    %v162 = vunpack.c.h.b16 %v107
    %v163 = vunpack.c.l.b16 %v108
    %v164 = vunpack.c.h.b16 %v108
    %v165 = vunpack.c.l.b16 %v109
    %v166 = vunpack.c.h.b16 %v109
    %v167 = vunpack.c.l.b16 %v110
    %v168 = vunpack.c.h.b16 %v110
    %v169 = vunpack.c.l.b16 %v111
    %v170 = vunpack.c.h.b16 %v111
    %v171 = vunpack.c.l.b16 %v112
    %v172 = vunpack.c.h.b16 %v112
    %v173 = vunpack.c.l.b16 %v113
    %v174 = vunpack.c.h.b16 %v113
    %v175 = vunpack.c.l.b16 %v114
    %v176 = vunpack.c.h.b16 %v114
    %v177 = vunpack.c.l.b16 %v115
    %v178 = vunpack.c.h.b16 %v115
    %v179 = vunpack.c.l.b16 %v116
    %v180 = vunpack.c.h.b16 %v116
    %v181 = vunpack.c.l.b16 %v117
    %v182 = vunpack.c.h.b16 %v117
    %v183 = vunpack.c.l.b16 %v118
    %v184 = vunpack.c.h.b16 %v118
    %v185 = vpack.c.b16 %v161, %v153
    %v186 = vpack.c.b16 %v162, %v154
    %v187 = vpack.c.b16 %v163, %v155
    %v188 = vpack.c.b16 %v164, %v156
    %v189 = vpack.c.b16 %v165, %v157
    %v190 = vpack.c.b16 %v166, %v158
    %v191 = vpack.c.b16 %v167, %v159
    %v192 = vpack.c.b16 %v168, %v160
    %v193 = vpack.c.b16 %v177, %v169
    %v194 = vpack.c.b16 %v178, %v170
    %v195 = vpack.c.b16 %v179, %v171
    %v196 = vpack.c.b16 %v180, %v172
    %v197 = vpack.c.b16 %v181, %v173
    %v198 = vpack.c.b16 %v182, %v174
    %v199 = vpack.c.b16 %v183, %v175
    %v200 = vpack.c.b16 %v184, %v176
    %vm217 = vcmask 261120
    %v219 = vsel %vm217, %v102, 0
    %221 = vmatpush.bf16.msra.mxu0 0
    %222 = vmatpush.bf16.msra.mxu0 0
    %223 = vmatpush.bf16.msra.mxu0 0
    %224 = vmatpush.bf16.msra.mxu0 0
    %225 = vmatpush.bf16.msra.mxu0 0
    %226 = vmatpush.bf16.msra.mxu0 0
    %227 = vmatpush.bf16.msra.mxu0 %v193
    %228 = vmatpush.bf16.msra.mxu0 %v185
    %229 = vmatmul.bf16.gmra.mxu0 %v219
    %v230 = vpop.f32.mrf.mxu0
    %v231 = vadd.f32 %v121, %v230
    %v232 = vpop.f32.mrf.mxu0
    %233 = vdwg.mxu0
    %234 = vmatpush.bf16.msra.mxu0 0
    %235 = vmatpush.bf16.msra.mxu0 0
    %236 = vmatpush.bf16.msra.mxu0 0
    %237 = vmatpush.bf16.msra.mxu0 0
    %238 = vmatpush.bf16.msra.mxu0 0
    %239 = vmatpush.bf16.msra.mxu0 0
    %240 = vmatpush.bf16.msra.mxu0 %v194
    %241 = vmatpush.bf16.msra.mxu0 %v186
    %242 = vmatmul.bf16.gmra.mxu0 %v219
    %v243 = vpop.f32.mrf.mxu0
    %v244 = vadd.f32 %v122, %v243
    %v245 = vpop.f32.mrf.mxu0
    %246 = vdwg.mxu0
    %247 = vmatpush.bf16.msra.mxu0 0
    %248 = vmatpush.bf16.msra.mxu0 0
    %249 = vmatpush.bf16.msra.mxu0 0
    %250 = vmatpush.bf16.msra.mxu0 0
    %251 = vmatpush.bf16.msra.mxu0 0
    %252 = vmatpush.bf16.msra.mxu0 0
    %253 = vmatpush.bf16.msra.mxu0 %v195
    %254 = vmatpush.bf16.msra.mxu0 %v187
    %255 = vmatmul.bf16.gmra.mxu0 %v219
    %v256 = vpop.f32.mrf.mxu0
    %v257 = vadd.f32 %v123, %v256
    %v258 = vpop.f32.mrf.mxu0
    %259 = vdwg.mxu0
    %260 = vmatpush.bf16.msra.mxu0 0
    %261 = vmatpush.bf16.msra.mxu0 0
    %262 = vmatpush.bf16.msra.mxu0 0
    %263 = vmatpush.bf16.msra.mxu0 0
    %264 = vmatpush.bf16.msra.mxu0 0
    %265 = vmatpush.bf16.msra.mxu0 0
    %266 = vmatpush.bf16.msra.mxu0 %v196
    %267 = vmatpush.bf16.msra.mxu0 %v188
    %268 = vmatmul.bf16.gmra.mxu0 %v219
    %v269 = vpop.f32.mrf.mxu0
    %v270 = vadd.f32 %v124, %v269
    %v271 = vpop.f32.mrf.mxu0
    %272 = vdwg.mxu0
    %273 = vmatpush.bf16.msra.mxu0 0
    %274 = vmatpush.bf16.msra.mxu0 0
    %275 = vmatpush.bf16.msra.mxu0 0
    %276 = vmatpush.bf16.msra.mxu0 0
    %277 = vmatpush.bf16.msra.mxu0 0
    %278 = vmatpush.bf16.msra.mxu0 0
    %279 = vmatpush.bf16.msra.mxu0 %v197
    %280 = vmatpush.bf16.msra.mxu0 %v189
    %281 = vmatmul.bf16.gmra.mxu0 %v219
    %v282 = vpop.f32.mrf.mxu0
    %v283 = vadd.f32 %v125, %v282
    %v284 = vpop.f32.mrf.mxu0
    %285 = vdwg.mxu0
    %286 = vmatpush.bf16.msra.mxu0 0
    %287 = vmatpush.bf16.msra.mxu0 0
    %288 = vmatpush.bf16.msra.mxu0 0
    %289 = vmatpush.bf16.msra.mxu0 0
    %290 = vmatpush.bf16.msra.mxu0 0
    %291 = vmatpush.bf16.msra.mxu0 0
    %292 = vmatpush.bf16.msra.mxu0 %v198
    %293 = vmatpush.bf16.msra.mxu0 %v190
    %294 = vmatmul.bf16.gmra.mxu0 %v219
    %v295 = vpop.f32.mrf.mxu0
    %v296 = vadd.f32 %v126, %v295
    %v297 = vpop.f32.mrf.mxu0
    %298 = vdwg.mxu0
    %299 = vmatpush.bf16.msra.mxu0 0
    %300 = vmatpush.bf16.msra.mxu0 0
    %301 = vmatpush.bf16.msra.mxu0 0
    %302 = vmatpush.bf16.msra.mxu0 0
    %303 = vmatpush.bf16.msra.mxu0 0
    %304 = vmatpush.bf16.msra.mxu0 0
    %305 = vmatpush.bf16.msra.mxu0 %v199
    %306 = vmatpush.bf16.msra.mxu0 %v191
    %307 = vmatmul.bf16.gmra.mxu0 %v219
    %v308 = vpop.f32.mrf.mxu0
    %v309 = vadd.f32 %v127, %v308
    %v310 = vpop.f32.mrf.mxu0
    %311 = vdwg.mxu0
    %312 = vmatpush.bf16.msra.mxu0 0
    %313 = vmatpush.bf16.msra.mxu0 0
    %314 = vmatpush.bf16.msra.mxu0 0
    %315 = vmatpush.bf16.msra.mxu0 0
    %316 = vmatpush.bf16.msra.mxu0 0
    %317 = vmatpush.bf16.msra.mxu0 0
    %318 = vmatpush.bf16.msra.mxu0 %v200
    %319 = vmatpush.bf16.msra.mxu0 %v192
    %320 = vmatmul.bf16.gmra.mxu0 %v219
    %v321 = vpop.f32.mrf.mxu0
    %v322 = vadd.f32 %v128, %v321
    %v323 = vpop.f32.mrf.mxu0
    %324 = vdwg.mxu0
    %v325 = vmax.f32 %v231, 0.0
    %v326 = vmax.f32 %v244, 0.0
    %v327 = vmax.f32 %v257, 0.0
    %v328 = vmax.f32 %v270, 0.0
    %v329 = vmax.f32 %v283, 0.0
    %v330 = vmax.f32 %v296, 0.0
    %v331 = vmax.f32 %v309, 0.0
    %v332 = vmax.f32 %v322, 0.0
    %v333 = vpack.c.bf16 %v325, %v325
    %v334 = vpack.c.bf16 %v326, %v326
    %v335 = vpack.c.bf16 %v327, %v327
    %v336 = vpack.c.bf16 %v328, %v328
    %v337 = vpack.c.bf16 %v329, %v329
    %v338 = vpack.c.bf16 %v330, %v330
    %v339 = vpack.c.bf16 %v331, %v331
    %v340 = vpack.c.bf16 %v332, %v332
    %v341 = vld [vmem:[#allocation8] sm:$0xff]
    %v342 = vld [vmem:[#allocation8 + $0x8] sm:$0xff]
    %v343 = vld [vmem:[#allocation8 + $0x10] sm:$0xff]
    %v344 = vld [vmem:[#allocation8 + $0x18] sm:$0xff]
    %v345 = vld [vmem:[#allocation8 + $0x20] sm:$0xff]
    %v346 = vld [vmem:[#allocation8 + $0x28] sm:$0xff]
    %v347 = vld [vmem:[#allocation8 + $0x30] sm:$0xff]
    %v348 = vld [vmem:[#allocation8 + $0x38] sm:$0xff]
    %v349 = vld [vmem:[#allocation8 + $0x40] sm:$0xff]
    %v350 = vld [vmem:[#allocation8 + $0x48] sm:$0xff]
    %v351 = vld [vmem:[#allocation8 + $0x50] sm:$0xff]
    %v352 = vld [vmem:[#allocation8 + $0x58] sm:$0xff]
    %v353 = vld [vmem:[#allocation8 + $0x60] sm:$0xff]
    %v354 = vld [vmem:[#allocation8 + $0x68] sm:$0xff]
    %v355 = vld [vmem:[#allocation8 + $0x70] sm:$0xff]
    %v356 = vld [vmem:[#allocation8 + $0x78] sm:$0xff]
    %v357 = vld [vmem:[#allocation8 + $0x80] sm:$0xff]
    %v358 = vld [vmem:[#allocation8 + $0x88] sm:$0xff]
    %v359 = vld [vmem:[#allocation8 + $0x90] sm:$0xff]
    %v360 = vld [vmem:[#allocation8 + $0x98] sm:$0xff]
    %v361 = vld [vmem:[#allocation8 + $0xa0] sm:$0xff]
    %v362 = vld [vmem:[#allocation8 + $0xa8] sm:$0xff]
    %v363 = vld [vmem:[#allocation8 + $0xb0] sm:$0xff]
    %v364 = vld [vmem:[#allocation8 + $0xb8] sm:$0xff]
    %v365 = vld [vmem:[#allocation8 + $0xc0] sm:$0xff]
    %v366 = vld [vmem:[#allocation8 + $0xc8] sm:$0xff]
    %v367 = vld [vmem:[#allocation8 + $0xd0] sm:$0xff]
    %v368 = vld [vmem:[#allocation8 + $0xd8] sm:$0xff]
    %v369 = vld [vmem:[#allocation8 + $0xe0] sm:$0xff]
    %v370 = vld [vmem:[#allocation8 + $0xe8] sm:$0xff]
    %v371 = vld [vmem:[#allocation8 + $0xf0] sm:$0xff]
    %v372 = vld [vmem:[#allocation8 + $0xf8] sm:$0xff]
    %v373 = vld [vmem:[#allocation8 + $0x100] sm:$0xff]
    %v374 = vld [vmem:[#allocation8 + $0x108] sm:$0xff]
    %v375 = vld [vmem:[#allocation8 + $0x110] sm:$0xff]
    %v376 = vld [vmem:[#allocation8 + $0x118] sm:$0xff]
    %v377 = vld [vmem:[#allocation8 + $0x120] sm:$0xff]
    %v378 = vld [vmem:[#allocation8 + $0x128] sm:$0xff]
    %v379 = vld [vmem:[#allocation8 + $0x130] sm:$0xff]
    %v380 = vld [vmem:[#allocation8 + $0x138] sm:$0xff]
    %v381 = vld [vmem:[#allocation8 + $0x140] sm:$0xff]
    %v382 = vld [vmem:[#allocation8 + $0x148] sm:$0xff]
    %v383 = vld [vmem:[#allocation8 + $0x150] sm:$0xff]
    %v384 = vld [vmem:[#allocation8 + $0x158] sm:$0xff]
    %v385 = vld [vmem:[#allocation8 + $0x160] sm:$0xff]
    %v386 = vld [vmem:[#allocation8 + $0x168] sm:$0xff]
    %v387 = vld [vmem:[#allocation8 + $0x170] sm:$0xff]
    %v388 = vld [vmem:[#allocation8 + $0x178] sm:$0xff]
    %v389 = vld [vmem:[#allocation8 + $0x180] sm:$0xff]
    %v390 = vld [vmem:[#allocation8 + $0x188] sm:$0xff]
    %v391 = vld [vmem:[#allocation8 + $0x190] sm:$0xff]
    %v392 = vld [vmem:[#allocation8 + $0x198] sm:$0xff]
    %v393 = vld [vmem:[#allocation8 + $0x1a0] sm:$0xff]
    %v394 = vld [vmem:[#allocation8 + $0x1a8] sm:$0xff]
    %v395 = vld [vmem:[#allocation8 + $0x1b0] sm:$0xff]
    %v396 = vld [vmem:[#allocation8 + $0x1b8] sm:$0xff]
    %v397 = vld [vmem:[#allocation8 + $0x1c0] sm:$0xff]
    %v398 = vld [vmem:[#allocation8 + $0x1c8] sm:$0xff]
    %v399 = vld [vmem:[#allocation8 + $0x1d0] sm:$0xff]
    %v400 = vld [vmem:[#allocation8 + $0x1d8] sm:$0xff]
    %v401 = vld [vmem:[#allocation8 + $0x1e0] sm:$0xff]
    %v402 = vld [vmem:[#allocation8 + $0x1e8] sm:$0xff]
    %v403 = vld [vmem:[#allocation8 + $0x1f0] sm:$0xff]
    %v404 = vld [vmem:[#allocation8 + $0x1f8] sm:$0xff]
    %v405 = vld [vmem:[#allocation8 + $0x200] sm:$0xff]
    %v406 = vld [vmem:[#allocation8 + $0x208] sm:$0xff]
    %v407 = vld [vmem:[#allocation8 + $0x210] sm:$0xff]
    %v408 = vld [vmem:[#allocation8 + $0x218] sm:$0xff]
    %v409 = vld [vmem:[#allocation8 + $0x220] sm:$0xff]
    %v410 = vld [vmem:[#allocation8 + $0x228] sm:$0xff]
    %v411 = vld [vmem:[#allocation8 + $0x230] sm:$0xff]
    %v412 = vld [vmem:[#allocation8 + $0x238] sm:$0xff]
    %v413 = vld [vmem:[#allocation8 + $0x240] sm:$0xff]
    %v414 = vld [vmem:[#allocation8 + $0x248] sm:$0xff]
    %v415 = vld [vmem:[#allocation8 + $0x250] sm:$0xff]
    %v416 = vld [vmem:[#allocation8 + $0x258] sm:$0xff]
    %v417 = vld [vmem:[#allocation8 + $0x260] sm:$0xff]
    %v418 = vld [vmem:[#allocation8 + $0x268] sm:$0xff]
    %v419 = vld [vmem:[#allocation8 + $0x270] sm:$0xff]
    %v420 = vld [vmem:[#allocation8 + $0x278] sm:$0xff]
    %v421 = vld [vmem:[#allocation8 + $0x280] sm:$0xff]
    %v422 = vld [vmem:[#allocation8 + $0x288] sm:$0xff]
    %v423 = vld [vmem:[#allocation8 + $0x290] sm:$0xff]
    %v424 = vld [vmem:[#allocation8 + $0x298] sm:$0xff]
    %v425 = vld [vmem:[#allocation8 + $0x2a0] sm:$0xff]
    %v426 = vld [vmem:[#allocation8 + $0x2a8] sm:$0xff]
    %v427 = vld [vmem:[#allocation8 + $0x2b0] sm:$0xff]
    %v428 = vld [vmem:[#allocation8 + $0x2b8] sm:$0xff]
    %v429 = vld [vmem:[#allocation8 + $0x2c0] sm:$0xff]
    %v430 = vld [vmem:[#allocation8 + $0x2c8] sm:$0xff]
    %v431 = vld [vmem:[#allocation8 + $0x2d0] sm:$0xff]
    %v432 = vld [vmem:[#allocation8 + $0x2d8] sm:$0xff]
    %v433 = vld [vmem:[#allocation8 + $0x2e0] sm:$0xff]
    %v434 = vld [vmem:[#allocation8 + $0x2e8] sm:$0xff]
    %v435 = vld [vmem:[#allocation8 + $0x2f0] sm:$0xff]
    %v436 = vld [vmem:[#allocation8 + $0x2f8] sm:$0xff]
    %v437 = vld [vmem:[#allocation8 + $0x300] sm:$0xff]
    %v438 = vld [vmem:[#allocation8 + $0x308] sm:$0xff]
    %v439 = vld [vmem:[#allocation8 + $0x310] sm:$0xff]
    %v440 = vld [vmem:[#allocation8 + $0x318] sm:$0xff]
    %v441 = vld [vmem:[#allocation8 + $0x320] sm:$0xff]
    %v442 = vld [vmem:[#allocation8 + $0x328] sm:$0xff]
    %v443 = vld [vmem:[#allocation8 + $0x330] sm:$0xff]
    %v444 = vld [vmem:[#allocation8 + $0x338] sm:$0xff]
    %v445 = vld [vmem:[#allocation8 + $0x340] sm:$0xff]
    %v446 = vld [vmem:[#allocation8 + $0x348] sm:$0xff]
    %v447 = vld [vmem:[#allocation8 + $0x350] sm:$0xff]
    %v448 = vld [vmem:[#allocation8 + $0x358] sm:$0xff]
    %v449 = vld [vmem:[#allocation8 + $0x360] sm:$0xff]
    %v450 = vld [vmem:[#allocation8 + $0x368] sm:$0xff]
    %v451 = vld [vmem:[#allocation8 + $0x370] sm:$0xff]
    %v452 = vld [vmem:[#allocation8 + $0x378] sm:$0xff]
    %v453 = vld [vmem:[#allocation8 + $0x380] sm:$0xff]
    %v454 = vld [vmem:[#allocation8 + $0x388] sm:$0xff]
    %v455 = vld [vmem:[#allocation8 + $0x390] sm:$0xff]
    %v456 = vld [vmem:[#allocation8 + $0x398] sm:$0xff]
    %v457 = vld [vmem:[#allocation8 + $0x3a0] sm:$0xff]
    %v458 = vld [vmem:[#allocation8 + $0x3a8] sm:$0xff]
    %v459 = vld [vmem:[#allocation8 + $0x3b0] sm:$0xff]
    %v460 = vld [vmem:[#allocation8 + $0x3b8] sm:$0xff]
    %v461 = vld [vmem:[#allocation8 + $0x3c0] sm:$0xff]
    %v462 = vld [vmem:[#allocation8 + $0x3c8] sm:$0xff]
    %v463 = vld [vmem:[#allocation8 + $0x3d0] sm:$0xff]
    %v464 = vld [vmem:[#allocation8 + $0x3d8] sm:$0xff]
    %v465 = vld [vmem:[#allocation8 + $0x3e0] sm:$0xff]
    %v466 = vld [vmem:[#allocation8 + $0x3e8] sm:$0xff]
    %v467 = vld [vmem:[#allocation8 + $0x3f0] sm:$0xff]
    %v468 = vld [vmem:[#allocation8 + $0x3f8] sm:$0xff]
    %v469 = vld [vmem:[%s4] sm:$0x3]
    %v471 = vperm.slane %v469, 0
    %v472 = vperm.slane %v469, 1
    %v603 = vunpack.c.l.b16 %v341
    %v604 = vunpack.c.h.b16 %v341
    %v605 = vunpack.c.l.b16 %v342
    %v606 = vunpack.c.h.b16 %v342
    %v607 = vunpack.c.l.b16 %v343
    %v608 = vunpack.c.h.b16 %v343
    %v609 = vunpack.c.l.b16 %v344
    %v610 = vunpack.c.h.b16 %v344
    %v611 = vunpack.c.l.b16 %v345
    %v612 = vunpack.c.h.b16 %v345
    %v613 = vunpack.c.l.b16 %v346
    %v614 = vunpack.c.h.b16 %v346
    %v615 = vunpack.c.l.b16 %v347
    %v616 = vunpack.c.h.b16 %v347
    %v617 = vunpack.c.l.b16 %v348
    %v618 = vunpack.c.h.b16 %v348
    %v619 = vunpack.c.l.b16 %v349
    %v620 = vunpack.c.h.b16 %v349
    %v621 = vunpack.c.l.b16 %v350
    %v622 = vunpack.c.h.b16 %v350
    %v623 = vunpack.c.l.b16 %v351
    %v624 = vunpack.c.h.b16 %v351
    %v625 = vunpack.c.l.b16 %v352
    %v626 = vunpack.c.h.b16 %v352
    %v627 = vunpack.c.l.b16 %v353
    %v628 = vunpack.c.h.b16 %v353
    %v629 = vunpack.c.l.b16 %v354
    %v630 = vunpack.c.h.b16 %v354
    %v631 = vunpack.c.l.b16 %v355
    %v632 = vunpack.c.h.b16 %v355
    %v633 = vunpack.c.l.b16 %v356
    %v634 = vunpack.c.h.b16 %v356
    %v635 = vunpack.c.l.b16 %v357
    %v636 = vunpack.c.h.b16 %v357
    %v637 = vunpack.c.l.b16 %v358
    %v638 = vunpack.c.h.b16 %v358
    %v639 = vunpack.c.l.b16 %v359
    %v640 = vunpack.c.h.b16 %v359
    %v641 = vunpack.c.l.b16 %v360
    %v642 = vunpack.c.h.b16 %v360
    %v643 = vunpack.c.l.b16 %v361
    %v644 = vunpack.c.h.b16 %v361
    %v645 = vunpack.c.l.b16 %v362
    %v646 = vunpack.c.h.b16 %v362
    %v647 = vunpack.c.l.b16 %v363
    %v648 = vunpack.c.h.b16 %v363
    %v649 = vunpack.c.l.b16 %v364
    %v650 = vunpack.c.h.b16 %v364
    %v651 = vunpack.c.l.b16 %v365
    %v652 = vunpack.c.h.b16 %v365
    %v653 = vunpack.c.l.b16 %v366
    %v654 = vunpack.c.h.b16 %v366
    %v655 = vunpack.c.l.b16 %v367
    %v656 = vunpack.c.h.b16 %v367
    %v657 = vunpack.c.l.b16 %v368
    %v658 = vunpack.c.h.b16 %v368
    %v659 = vunpack.c.l.b16 %v369
    %v660 = vunpack.c.h.b16 %v369
    %v661 = vunpack.c.l.b16 %v370
    %v662 = vunpack.c.h.b16 %v370
    %v663 = vunpack.c.l.b16 %v371
    %v664 = vunpack.c.h.b16 %v371
    %v665 = vunpack.c.l.b16 %v372
    %v666 = vunpack.c.h.b16 %v372
    %v667 = vunpack.c.l.b16 %v373
    %v668 = vunpack.c.h.b16 %v373
    %v669 = vunpack.c.l.b16 %v374
    %v670 = vunpack.c.h.b16 %v374
    %v671 = vunpack.c.l.b16 %v375
    %v672 = vunpack.c.h.b16 %v375
    %v673 = vunpack.c.l.b16 %v376
    %v674 = vunpack.c.h.b16 %v376
    %v675 = vunpack.c.l.b16 %v377
    %v676 = vunpack.c.h.b16 %v377
    %v677 = vunpack.c.l.b16 %v378
    %v678 = vunpack.c.h.b16 %v378
    %v679 = vunpack.c.l.b16 %v379
    %v680 = vunpack.c.h.b16 %v379
    %v681 = vunpack.c.l.b16 %v380
    %v682 = vunpack.c.h.b16 %v380
    %v683 = vunpack.c.l.b16 %v381
    %v684 = vunpack.c.h.b16 %v381
    %v685 = vunpack.c.l.b16 %v382
    %v686 = vunpack.c.h.b16 %v382
    %v687 = vunpack.c.l.b16 %v383
    %v688 = vunpack.c.h.b16 %v383
    %v689 = vunpack.c.l.b16 %v384
    %v690 = vunpack.c.h.b16 %v384
    %v691 = vunpack.c.l.b16 %v385
    %v692 = vunpack.c.h.b16 %v385
    %v693 = vunpack.c.l.b16 %v386
    %v694 = vunpack.c.h.b16 %v386
    %v695 = vunpack.c.l.b16 %v387
    %v696 = vunpack.c.h.b16 %v387
    %v697 = vunpack.c.l.b16 %v388
    %v698 = vunpack.c.h.b16 %v388
    %v699 = vunpack.c.l.b16 %v389
    %v700 = vunpack.c.h.b16 %v389
    %v701 = vunpack.c.l.b16 %v390
    %v702 = vunpack.c.h.b16 %v390
    %v703 = vunpack.c.l.b16 %v391
    %v704 = vunpack.c.h.b16 %v391
    %v705 = vunpack.c.l.b16 %v392
    %v706 = vunpack.c.h.b16 %v392
    %v707 = vunpack.c.l.b16 %v393
    %v708 = vunpack.c.h.b16 %v393
    %v709 = vunpack.c.l.b16 %v394
    %v710 = vunpack.c.h.b16 %v394
    %v711 = vunpack.c.l.b16 %v395
    %v712 = vunpack.c.h.b16 %v395
    %v713 = vunpack.c.l.b16 %v396
    %v714 = vunpack.c.h.b16 %v396
    %v715 = vunpack.c.l.b16 %v397
    %v716 = vunpack.c.h.b16 %v397
    %v717 = vunpack.c.l.b16 %v398
    %v718 = vunpack.c.h.b16 %v398
    %v719 = vunpack.c.l.b16 %v399
    %v720 = vunpack.c.h.b16 %v399
    %v721 = vunpack.c.l.b16 %v400
    %v722 = vunpack.c.h.b16 %v400
    %v723 = vunpack.c.l.b16 %v401
    %v724 = vunpack.c.h.b16 %v401
    %v725 = vunpack.c.l.b16 %v402
    %v726 = vunpack.c.h.b16 %v402
    %v727 = vunpack.c.l.b16 %v403
    %v728 = vunpack.c.h.b16 %v403
    %v729 = vunpack.c.l.b16 %v404
    %v730 = vunpack.c.h.b16 %v404
    %v731 = vunpack.c.l.b16 %v405
    %v732 = vunpack.c.h.b16 %v405
    %v733 = vunpack.c.l.b16 %v406
    %v734 = vunpack.c.h.b16 %v406
    %v735 = vunpack.c.l.b16 %v407
    %v736 = vunpack.c.h.b16 %v407
    %v737 = vunpack.c.l.b16 %v408
    %v738 = vunpack.c.h.b16 %v408
    %v739 = vunpack.c.l.b16 %v409
    %v740 = vunpack.c.h.b16 %v409
    %v741 = vunpack.c.l.b16 %v410
    %v742 = vunpack.c.h.b16 %v410
    %v743 = vunpack.c.l.b16 %v411
    %v744 = vunpack.c.h.b16 %v411
    %v745 = vunpack.c.l.b16 %v412
    %v746 = vunpack.c.h.b16 %v412
    %v747 = vunpack.c.l.b16 %v413
    %v748 = vunpack.c.h.b16 %v413
    %v749 = vunpack.c.l.b16 %v414
    %v750 = vunpack.c.h.b16 %v414
    %v751 = vunpack.c.l.b16 %v415
    %v752 = vunpack.c.h.b16 %v415
    %v753 = vunpack.c.l.b16 %v416
    %v754 = vunpack.c.h.b16 %v416
    %v755 = vunpack.c.l.b16 %v417
    %v756 = vunpack.c.h.b16 %v417
    %v757 = vunpack.c.l.b16 %v418
    %v758 = vunpack.c.h.b16 %v418
    %v759 = vunpack.c.l.b16 %v419
    %v760 = vunpack.c.h.b16 %v419
    %v761 = vunpack.c.l.b16 %v420
    %v762 = vunpack.c.h.b16 %v420
    %v763 = vunpack.c.l.b16 %v421
    %v764 = vunpack.c.h.b16 %v421
    %v765 = vunpack.c.l.b16 %v422
    %v766 = vunpack.c.h.b16 %v422
    %v767 = vunpack.c.l.b16 %v423
    %v768 = vunpack.c.h.b16 %v423
    %v769 = vunpack.c.l.b16 %v424
    %v770 = vunpack.c.h.b16 %v424
    %v771 = vunpack.c.l.b16 %v425
    %v772 = vunpack.c.h.b16 %v425
    %v773 = vunpack.c.l.b16 %v426
    %v774 = vunpack.c.h.b16 %v426
    %v775 = vunpack.c.l.b16 %v427
    %v776 = vunpack.c.h.b16 %v427
    %v777 = vunpack.c.l.b16 %v428
    %v778 = vunpack.c.h.b16 %v428
    %v779 = vunpack.c.l.b16 %v429
    %v780 = vunpack.c.h.b16 %v429
    %v781 = vunpack.c.l.b16 %v430
    %v782 = vunpack.c.h.b16 %v430
    %v783 = vunpack.c.l.b16 %v431
    %v784 = vunpack.c.h.b16 %v431
    %v785 = vunpack.c.l.b16 %v432
    %v786 = vunpack.c.h.b16 %v432
    %v787 = vunpack.c.l.b16 %v433
    %v788 = vunpack.c.h.b16 %v433
    %v789 = vunpack.c.l.b16 %v434
    %v790 = vunpack.c.h.b16 %v434
    %v791 = vunpack.c.l.b16 %v435
    %v792 = vunpack.c.h.b16 %v435
    %v793 = vunpack.c.l.b16 %v436
    %v794 = vunpack.c.h.b16 %v436
    %v795 = vunpack.c.l.b16 %v437
    %v796 = vunpack.c.h.b16 %v437
    %v797 = vunpack.c.l.b16 %v438
    %v798 = vunpack.c.h.b16 %v438
    %v799 = vunpack.c.l.b16 %v439
    %v800 = vunpack.c.h.b16 %v439
    %v801 = vunpack.c.l.b16 %v440
    %v802 = vunpack.c.h.b16 %v440
    %v803 = vunpack.c.l.b16 %v441
    %v804 = vunpack.c.h.b16 %v441
    %v805 = vunpack.c.l.b16 %v442
    %v806 = vunpack.c.h.b16 %v442
    %v807 = vunpack.c.l.b16 %v443
    %v808 = vunpack.c.h.b16 %v443
    %v809 = vunpack.c.l.b16 %v444
    %v810 = vunpack.c.h.b16 %v444
    %v811 = vunpack.c.l.b16 %v445
    %v812 = vunpack.c.h.b16 %v445
    %v813 = vunpack.c.l.b16 %v446
    %v814 = vunpack.c.h.b16 %v446
    %v815 = vunpack.c.l.b16 %v447
    %v816 = vunpack.c.h.b16 %v447
    %v817 = vunpack.c.l.b16 %v448
    %v818 = vunpack.c.h.b16 %v448
    %v819 = vunpack.c.l.b16 %v449
    %v820 = vunpack.c.h.b16 %v449
    %v821 = vunpack.c.l.b16 %v450
    %v822 = vunpack.c.h.b16 %v450
    %v823 = vunpack.c.l.b16 %v451
    %v824 = vunpack.c.h.b16 %v451
    %v825 = vunpack.c.l.b16 %v452
    %v826 = vunpack.c.h.b16 %v452
    %v827 = vunpack.c.l.b16 %v453
    %v828 = vunpack.c.h.b16 %v453
    %v829 = vunpack.c.l.b16 %v454
    %v830 = vunpack.c.h.b16 %v454
    %v831 = vunpack.c.l.b16 %v455
    %v832 = vunpack.c.h.b16 %v455
    %v833 = vunpack.c.l.b16 %v456
    %v834 = vunpack.c.h.b16 %v456
    %v835 = vunpack.c.l.b16 %v457
    %v836 = vunpack.c.h.b16 %v457
    %v837 = vunpack.c.l.b16 %v458
    %v838 = vunpack.c.h.b16 %v458
    %v839 = vunpack.c.l.b16 %v459
    %v840 = vunpack.c.h.b16 %v459
    %v841 = vunpack.c.l.b16 %v460
    %v842 = vunpack.c.h.b16 %v460
    %v843 = vunpack.c.l.b16 %v461
    %v844 = vunpack.c.h.b16 %v461
    %v845 = vunpack.c.l.b16 %v462
    %v846 = vunpack.c.h.b16 %v462
    %v847 = vunpack.c.l.b16 %v463
    %v848 = vunpack.c.h.b16 %v463
    %v849 = vunpack.c.l.b16 %v464
    %v850 = vunpack.c.h.b16 %v464
    %v851 = vunpack.c.l.b16 %v465
    %v852 = vunpack.c.h.b16 %v465
    %v853 = vunpack.c.l.b16 %v466
    %v854 = vunpack.c.h.b16 %v466
    %v855 = vunpack.c.l.b16 %v467
    %v856 = vunpack.c.h.b16 %v467
    %v857 = vunpack.c.l.b16 %v468
    %v858 = vunpack.c.h.b16 %v468
    %v859 = vpack.c.b16 %v605, %v603
    %v860 = vpack.c.b16 %v606, %v604
    %v861 = vpack.c.b16 %v609, %v607
    %v862 = vpack.c.b16 %v610, %v608
    %v863 = vpack.c.b16 %v613, %v611
    %v864 = vpack.c.b16 %v614, %v612
    %v865 = vpack.c.b16 %v617, %v615
    %v866 = vpack.c.b16 %v618, %v616
    %v867 = vpack.c.b16 %v621, %v619
    %v868 = vpack.c.b16 %v622, %v620
    %v869 = vpack.c.b16 %v625, %v623
    %v870 = vpack.c.b16 %v626, %v624
    %v871 = vpack.c.b16 %v629, %v627
    %v872 = vpack.c.b16 %v630, %v628
    %v873 = vpack.c.b16 %v633, %v631
    %v874 = vpack.c.b16 %v634, %v632
    %v875 = vpack.c.b16 %v637, %v635
    %v876 = vpack.c.b16 %v638, %v636
    %v877 = vpack.c.b16 %v641, %v639
    %v878 = vpack.c.b16 %v642, %v640
    %v879 = vpack.c.b16 %v645, %v643
    %v880 = vpack.c.b16 %v646, %v644
    %v881 = vpack.c.b16 %v649, %v647
    %v882 = vpack.c.b16 %v650, %v648
    %v883 = vpack.c.b16 %v653, %v651
    %v884 = vpack.c.b16 %v654, %v652
    %v885 = vpack.c.b16 %v657, %v655
    %v886 = vpack.c.b16 %v658, %v656
    %v887 = vpack.c.b16 %v661, %v659
    %v888 = vpack.c.b16 %v662, %v660
    %v889 = vpack.c.b16 %v665, %v663
    %v890 = vpack.c.b16 %v666, %v664
    %v891 = vpack.c.b16 %v669, %v667
    %v892 = vpack.c.b16 %v670, %v668
    %v893 = vpack.c.b16 %v673, %v671
    %v894 = vpack.c.b16 %v674, %v672
    %v895 = vpack.c.b16 %v677, %v675
    %v896 = vpack.c.b16 %v678, %v676
    %v897 = vpack.c.b16 %v681, %v679
    %v898 = vpack.c.b16 %v682, %v680
    %v899 = vpack.c.b16 %v685, %v683
    %v900 = vpack.c.b16 %v686, %v684
    %v901 = vpack.c.b16 %v689, %v687
    %v902 = vpack.c.b16 %v690, %v688
    %v903 = vpack.c.b16 %v693, %v691
    %v904 = vpack.c.b16 %v694, %v692
    %v905 = vpack.c.b16 %v697, %v695
    %v906 = vpack.c.b16 %v698, %v696
    %v907 = vpack.c.b16 %v701, %v699
    %v908 = vpack.c.b16 %v702, %v700
    %v909 = vpack.c.b16 %v705, %v703
    %v910 = vpack.c.b16 %v706, %v704
    %v911 = vpack.c.b16 %v709, %v707
    %v912 = vpack.c.b16 %v710, %v708
    %v913 = vpack.c.b16 %v713, %v711
    %v914 = vpack.c.b16 %v714, %v712
    %v915 = vpack.c.b16 %v717, %v715
    %v916 = vpack.c.b16 %v718, %v716
    %v917 = vpack.c.b16 %v721, %v719
    %v918 = vpack.c.b16 %v722, %v720
    %v919 = vpack.c.b16 %v725, %v723
    %v920 = vpack.c.b16 %v726, %v724
    %v921 = vpack.c.b16 %v729, %v727
    %v922 = vpack.c.b16 %v730, %v728
    %v923 = vpack.c.b16 %v733, %v731
    %v924 = vpack.c.b16 %v734, %v732
    %v925 = vpack.c.b16 %v737, %v735
    %v926 = vpack.c.b16 %v738, %v736
    %v927 = vpack.c.b16 %v741, %v739
    %v928 = vpack.c.b16 %v742, %v740
    %v929 = vpack.c.b16 %v745, %v743
    %v930 = vpack.c.b16 %v746, %v744
    %v931 = vpack.c.b16 %v749, %v747
    %v932 = vpack.c.b16 %v750, %v748
    %v933 = vpack.c.b16 %v753, %v751
    %v934 = vpack.c.b16 %v754, %v752
    %v935 = vpack.c.b16 %v757, %v755
    %v936 = vpack.c.b16 %v758, %v756
    %v937 = vpack.c.b16 %v761, %v759
    %v938 = vpack.c.b16 %v762, %v760
    %v939 = vpack.c.b16 %v765, %v763
    %v940 = vpack.c.b16 %v766, %v764
    %v941 = vpack.c.b16 %v769, %v767
    %v942 = vpack.c.b16 %v770, %v768
    %v943 = vpack.c.b16 %v773, %v771
    %v944 = vpack.c.b16 %v774, %v772
    %v945 = vpack.c.b16 %v777, %v775
    %v946 = vpack.c.b16 %v778, %v776
    %v947 = vpack.c.b16 %v781, %v779
    %v948 = vpack.c.b16 %v782, %v780
    %v949 = vpack.c.b16 %v785, %v783
    %v950 = vpack.c.b16 %v786, %v784
    %v951 = vpack.c.b16 %v789, %v787
    %v952 = vpack.c.b16 %v790, %v788
    %v953 = vpack.c.b16 %v793, %v791
    %v954 = vpack.c.b16 %v794, %v792
    %v955 = vpack.c.b16 %v797, %v795
    %v956 = vpack.c.b16 %v798, %v796
    %v957 = vpack.c.b16 %v801, %v799
    %v958 = vpack.c.b16 %v802, %v800
    %v959 = vpack.c.b16 %v805, %v803
    %v960 = vpack.c.b16 %v806, %v804
    %v961 = vpack.c.b16 %v809, %v807
    %v962 = vpack.c.b16 %v810, %v808
    %v963 = vpack.c.b16 %v813, %v811
    %v964 = vpack.c.b16 %v814, %v812
    %v965 = vpack.c.b16 %v817, %v815
    %v966 = vpack.c.b16 %v818, %v816
    %v967 = vpack.c.b16 %v821, %v819
    %v968 = vpack.c.b16 %v822, %v820
    %v969 = vpack.c.b16 %v825, %v823
    %v970 = vpack.c.b16 %v826, %v824
    %v971 = vpack.c.b16 %v829, %v827
    %v972 = vpack.c.b16 %v830, %v828
    %v973 = vpack.c.b16 %v833, %v831
    %v974 = vpack.c.b16 %v834, %v832
    %v975 = vpack.c.b16 %v837, %v835
    %v976 = vpack.c.b16 %v838, %v836
    %v977 = vpack.c.b16 %v841, %v839
    %v978 = vpack.c.b16 %v842, %v840
    %v979 = vpack.c.b16 %v845, %v843
    %v980 = vpack.c.b16 %v846, %v844
    %v981 = vpack.c.b16 %v849, %v847
    %v982 = vpack.c.b16 %v850, %v848
    %v983 = vpack.c.b16 %v853, %v851
    %v984 = vpack.c.b16 %v854, %v852
    %v985 = vpack.c.b16 %v857, %v855
    %v986 = vpack.c.b16 %v858, %v856
    %1115 = vmatpush.bf16.msra.mxu0 %v873
    %1116 = vmatpush.bf16.msra.mxu0 %v871
    %1117 = vmatpush.bf16.msra.mxu0 %v869
    %1118 = vmatpush.bf16.msra.mxu0 %v867
    %1119 = vmatpush.bf16.msra.mxu0 %v865
    %1120 = vmatpush.bf16.msra.mxu0 %v863
    %1121 = vmatpush.bf16.msra.mxu0 %v861
    %1122 = vmatpush.bf16.msra.mxu0 %v859
    %1123 = vmatmul.bf16.gmra.mxu0 %v333
    %v1124 = vpop.f32.mrf.mxu0
    %v1125 = vadd.f32 %v471, %v1124
    %v1126 = vpop.f32.mrf.mxu0
    %1127 = vdwg.mxu0
    %1128 = vmatpush.bf16.msra.mxu0 %v889
    %1129 = vmatpush.bf16.msra.mxu0 %v887
    %1130 = vmatpush.bf16.msra.mxu0 %v885
    %1131 = vmatpush.bf16.msra.mxu0 %v883
    %1132 = vmatpush.bf16.msra.mxu0 %v881
    %1133 = vmatpush.bf16.msra.mxu0 %v879
    %1134 = vmatpush.bf16.msra.mxu0 %v877
    %1135 = vmatpush.bf16.msra.mxu0 %v875
    %1136 = vmatmul.bf16.gmra.mxu0 %v334
    %v1137 = vpop.f32.mrf.mxu0
    %v1138 = vadd.f32 %v1125, %v1137
    %v1139 = vpop.f32.mrf.mxu0
    %1140 = vdwg.mxu0
    %1141 = vmatpush.bf16.msra.mxu0 %v905
    %1142 = vmatpush.bf16.msra.mxu0 %v903
    %1143 = vmatpush.bf16.msra.mxu0 %v901
    %1144 = vmatpush.bf16.msra.mxu0 %v899
    %1145 = vmatpush.bf16.msra.mxu0 %v897
    %1146 = vmatpush.bf16.msra.mxu0 %v895
    %1147 = vmatpush.bf16.msra.mxu0 %v893
    %1148 = vmatpush.bf16.msra.mxu0 %v891
    %1149 = vmatmul.bf16.gmra.mxu0 %v335
    %v1150 = vpop.f32.mrf.mxu0
    %v1151 = vadd.f32 %v1138, %v1150
    %v1152 = vpop.f32.mrf.mxu0
    %1153 = vdwg.mxu0
    %1154 = vmatpush.bf16.msra.mxu0 %v921
    %1155 = vmatpush.bf16.msra.mxu0 %v919
    %1156 = vmatpush.bf16.msra.mxu0 %v917
    %1157 = vmatpush.bf16.msra.mxu0 %v915
    %1158 = vmatpush.bf16.msra.mxu0 %v913
    %1159 = vmatpush.bf16.msra.mxu0 %v911
    %1160 = vmatpush.bf16.msra.mxu0 %v909
    %1161 = vmatpush.bf16.msra.mxu0 %v907
    %1162 = vmatmul.bf16.gmra.mxu0 %v336
    %v1163 = vpop.f32.mrf.mxu0
    %v1164 = vadd.f32 %v1151, %v1163
    %v1165 = vpop.f32.mrf.mxu0
    %1166 = vdwg.mxu0
    %1167 = vmatpush.bf16.msra.mxu0 %v937
    %1168 = vmatpush.bf16.msra.mxu0 %v935
    %1169 = vmatpush.bf16.msra.mxu0 %v933
    %1170 = vmatpush.bf16.msra.mxu0 %v931
    %1171 = vmatpush.bf16.msra.mxu0 %v929
    %1172 = vmatpush.bf16.msra.mxu0 %v927
    %1173 = vmatpush.bf16.msra.mxu0 %v925
    %1174 = vmatpush.bf16.msra.mxu0 %v923
    %1175 = vmatmul.bf16.gmra.mxu0 %v337
    %v1176 = vpop.f32.mrf.mxu0
    %v1177 = vadd.f32 %v1164, %v1176
    %v1178 = vpop.f32.mrf.mxu0
    %1179 = vdwg.mxu0
    %1180 = vmatpush.bf16.msra.mxu0 %v953
    %1181 = vmatpush.bf16.msra.mxu0 %v951
    %1182 = vmatpush.bf16.msra.mxu0 %v949
    %1183 = vmatpush.bf16.msra.mxu0 %v947
    %1184 = vmatpush.bf16.msra.mxu0 %v945
    %1185 = vmatpush.bf16.msra.mxu0 %v943
    %1186 = vmatpush.bf16.msra.mxu0 %v941
    %1187 = vmatpush.bf16.msra.mxu0 %v939
    %1188 = vmatmul.bf16.gmra.mxu0 %v338
    %v1189 = vpop.f32.mrf.mxu0
    %v1190 = vadd.f32 %v1177, %v1189
    %v1191 = vpop.f32.mrf.mxu0
    %1192 = vdwg.mxu0
    %1193 = vmatpush.bf16.msra.mxu0 %v969
    %1194 = vmatpush.bf16.msra.mxu0 %v967
    %1195 = vmatpush.bf16.msra.mxu0 %v965
    %1196 = vmatpush.bf16.msra.mxu0 %v963
    %1197 = vmatpush.bf16.msra.mxu0 %v961
    %1198 = vmatpush.bf16.msra.mxu0 %v959
    %1199 = vmatpush.bf16.msra.mxu0 %v957
    %1200 = vmatpush.bf16.msra.mxu0 %v955
    %1201 = vmatmul.bf16.gmra.mxu0 %v339
    %v1202 = vpop.f32.mrf.mxu0
    %v1203 = vadd.f32 %v1190, %v1202
    %v1204 = vpop.f32.mrf.mxu0
    %1205 = vdwg.mxu0
    %1206 = vmatpush.bf16.msra.mxu0 %v985
    %1207 = vmatpush.bf16.msra.mxu0 %v983
    %1208 = vmatpush.bf16.msra.mxu0 %v981
    %1209 = vmatpush.bf16.msra.mxu0 %v979
    %1210 = vmatpush.bf16.msra.mxu0 %v977
    %1211 = vmatpush.bf16.msra.mxu0 %v975
    %1212 = vmatpush.bf16.msra.mxu0 %v973
    %1213 = vmatpush.bf16.msra.mxu0 %v971
    %1214 = vmatmul.bf16.gmra.mxu0 %v340
    %v1215 = vpop.f32.mrf.mxu0
    %v1216 = vadd.f32 %v1203, %v1215
    %v1217 = vpop.f32.mrf.mxu0
    %1218 = vdwg.mxu0
    %1219 = vmatpush.bf16.msra.mxu0 %v874
    %1220 = vmatpush.bf16.msra.mxu0 %v872
    %1221 = vmatpush.bf16.msra.mxu0 %v870
    %1222 = vmatpush.bf16.msra.mxu0 %v868
    %1223 = vmatpush.bf16.msra.mxu0 %v866
    %1224 = vmatpush.bf16.msra.mxu0 %v864
    %1225 = vmatpush.bf16.msra.mxu0 %v862
    %1226 = vmatpush.bf16.msra.mxu0 %v860
    %1227 = vmatmul.bf16.gmra.mxu0 %v333
    %v1228 = vpop.f32.mrf.mxu0
    %v1229 = vadd.f32 %v472, %v1228
    %v1230 = vpop.f32.mrf.mxu0
    %1231 = vdwg.mxu0
    %1232 = vmatpush.bf16.msra.mxu0 %v890
    %1233 = vmatpush.bf16.msra.mxu0 %v888
    %1234 = vmatpush.bf16.msra.mxu0 %v886
    %1235 = vmatpush.bf16.msra.mxu0 %v884
    %1236 = vmatpush.bf16.msra.mxu0 %v882
    %1237 = vmatpush.bf16.msra.mxu0 %v880
    %1238 = vmatpush.bf16.msra.mxu0 %v878
    %1239 = vmatpush.bf16.msra.mxu0 %v876
    %1240 = vmatmul.bf16.gmra.mxu0 %v334
    %v1241 = vpop.f32.mrf.mxu0
    %v1242 = vadd.f32 %v1229, %v1241
    %v1243 = vpop.f32.mrf.mxu0
    %1244 = vdwg.mxu0
    %1245 = vmatpush.bf16.msra.mxu0 %v906
    %1246 = vmatpush.bf16.msra.mxu0 %v904
    %1247 = vmatpush.bf16.msra.mxu0 %v902
    %1248 = vmatpush.bf16.msra.mxu0 %v900
    %1249 = vmatpush.bf16.msra.mxu0 %v898
    %1250 = vmatpush.bf16.msra.mxu0 %v896
    %1251 = vmatpush.bf16.msra.mxu0 %v894
    %1252 = vmatpush.bf16.msra.mxu0 %v892
    %1253 = vmatmul.bf16.gmra.mxu0 %v335
    %v1254 = vpop.f32.mrf.mxu0
    %v1255 = vadd.f32 %v1242, %v1254
    %v1256 = vpop.f32.mrf.mxu0
    %1257 = vdwg.mxu0
    %1258 = vmatpush.bf16.msra.mxu0 %v922
    %1259 = vmatpush.bf16.msra.mxu0 %v920
    %1260 = vmatpush.bf16.msra.mxu0 %v918
    %1261 = vmatpush.bf16.msra.mxu0 %v916
    %1262 = vmatpush.bf16.msra.mxu0 %v914
    %1263 = vmatpush.bf16.msra.mxu0 %v912
    %1264 = vmatpush.bf16.msra.mxu0 %v910
    %1265 = vmatpush.bf16.msra.mxu0 %v908
    %1266 = vmatmul.bf16.gmra.mxu0 %v336
    %v1267 = vpop.f32.mrf.mxu0
    %v1268 = vadd.f32 %v1255, %v1267
    %v1269 = vpop.f32.mrf.mxu0
    %1270 = vdwg.mxu0
    %1271 = vmatpush.bf16.msra.mxu0 %v938
    %1272 = vmatpush.bf16.msra.mxu0 %v936
    %1273 = vmatpush.bf16.msra.mxu0 %v934
    %1274 = vmatpush.bf16.msra.mxu0 %v932
    %1275 = vmatpush.bf16.msra.mxu0 %v930
    %1276 = vmatpush.bf16.msra.mxu0 %v928
    %1277 = vmatpush.bf16.msra.mxu0 %v926
    %1278 = vmatpush.bf16.msra.mxu0 %v924
    %1279 = vmatmul.bf16.gmra.mxu0 %v337
    %v1280 = vpop.f32.mrf.mxu0
    %v1281 = vadd.f32 %v1268, %v1280
    %v1282 = vpop.f32.mrf.mxu0
    %1283 = vdwg.mxu0
    %1284 = vmatpush.bf16.msra.mxu0 %v954
    %1285 = vmatpush.bf16.msra.mxu0 %v952
    %1286 = vmatpush.bf16.msra.mxu0 %v950
    %1287 = vmatpush.bf16.msra.mxu0 %v948
    %1288 = vmatpush.bf16.msra.mxu0 %v946
    %1289 = vmatpush.bf16.msra.mxu0 %v944
    %1290 = vmatpush.bf16.msra.mxu0 %v942
    %1291 = vmatpush.bf16.msra.mxu0 %v940
    %1292 = vmatmul.bf16.gmra.mxu0 %v338
    %v1293 = vpop.f32.mrf.mxu0
    %v1294 = vadd.f32 %v1281, %v1293
    %v1295 = vpop.f32.mrf.mxu0
    %1296 = vdwg.mxu0
    %1297 = vmatpush.bf16.msra.mxu0 %v970
    %1298 = vmatpush.bf16.msra.mxu0 %v968
    %1299 = vmatpush.bf16.msra.mxu0 %v966
    %1300 = vmatpush.bf16.msra.mxu0 %v964
    %1301 = vmatpush.bf16.msra.mxu0 %v962
    %1302 = vmatpush.bf16.msra.mxu0 %v960
    %1303 = vmatpush.bf16.msra.mxu0 %v958
    %1304 = vmatpush.bf16.msra.mxu0 %v956
    %1305 = vmatmul.bf16.gmra.mxu0 %v339
    %v1306 = vpop.f32.mrf.mxu0
    %v1307 = vadd.f32 %v1294, %v1306
    %v1308 = vpop.f32.mrf.mxu0
    %1309 = vdwg.mxu0
    %1310 = vmatpush.bf16.msra.mxu0 %v986
    %1311 = vmatpush.bf16.msra.mxu0 %v984
    %1312 = vmatpush.bf16.msra.mxu0 %v982
    %1313 = vmatpush.bf16.msra.mxu0 %v980
    %1314 = vmatpush.bf16.msra.mxu0 %v978
    %1315 = vmatpush.bf16.msra.mxu0 %v976
    %1316 = vmatpush.bf16.msra.mxu0 %v974
    %1317 = vmatpush.bf16.msra.mxu0 %v972
    %1318 = vmatmul.bf16.gmra.mxu0 %v340
    %v1319 = vpop.f32.mrf.mxu0
    %v1320 = vadd.f32 %v1307, %v1319
    %v1321 = vpop.f32.mrf.mxu0
    %1322 = vdwg.mxu0
    %v1323 = vmax.f32 %v1216, 0.0
    %v1324 = vmax.f32 %v1320, 0.0
    %v1325 = vpack.c.bf16 %v1323, %v1323
    %v1326 = vpack.c.bf16 %v1324, %v1324
    %v1327 = vld [vmem:[#allocation10] sm:$0xf]
    %v1328 = vld [vmem:[#allocation10 + $0x4] sm:$0xf]
    %v1329 = vld [vmem:[#allocation10 + $0x8] sm:$0xf]
    %v1330 = vld [vmem:[#allocation10 + $0xc] sm:$0xf]
    %v1331 = vld [vmem:[#allocation10 + $0x10] sm:$0xf]
    %v1332 = vld [vmem:[#allocation10 + $0x14] sm:$0xf]
    %v1333 = vld [vmem:[#allocation10 + $0x18] sm:$0xf]
    %v1334 = vld [vmem:[#allocation10 + $0x1c] sm:$0xf]
    %v1335 = vld [vmem:[#allocation10 + $0x20] sm:$0xf]
    %v1336 = vld [vmem:[#allocation10 + $0x24] sm:$0xf]
    %v1337 = vld [vmem:[#allocation10 + $0x28] sm:$0xf]
    %v1338 = vld [vmem:[#allocation10 + $0x2c] sm:$0xf]
    %v1339 = vld [vmem:[#allocation10 + $0x30] sm:$0xf]
    %v1340 = vld [vmem:[#allocation10 + $0x34] sm:$0xf]
    %v1341 = vld [vmem:[#allocation10 + $0x38] sm:$0xf]
    %v1342 = vld [vmem:[#allocation10 + $0x3c] sm:$0xf]
    %v1343 = vld [vmem:[#allocation10 + $0x40] sm:$0xf]
    %v1344 = vld [vmem:[#allocation10 + $0x44] sm:$0xf]
    %v1345 = vld [vmem:[#allocation10 + $0x48] sm:$0xf]
    %v1346 = vld [vmem:[#allocation10 + $0x4c] sm:$0xf]
    %v1347 = vld [vmem:[#allocation10 + $0x50] sm:$0xf]
    %v1348 = vld [vmem:[#allocation10 + $0x54] sm:$0xf]
    %v1349 = vld [vmem:[#allocation10 + $0x58] sm:$0xf]
    %v1350 = vld [vmem:[#allocation10 + $0x5c] sm:$0xf]
    %v1351 = vld [vmem:[#allocation10 + $0x60] sm:$0xf]
    %v1352 = vld [vmem:[#allocation10 + $0x64] sm:$0xf]
    %v1353 = vld [vmem:[#allocation10 + $0x68] sm:$0xf]
    %v1354 = vld [vmem:[#allocation10 + $0x6c] sm:$0xf]
    %v1355 = vld [vmem:[#allocation10 + $0x70] sm:$0xf]
    %v1356 = vld [vmem:[#allocation10 + $0x74] sm:$0xf]
    %v1357 = vld [vmem:[#allocation10 + $0x78] sm:$0xf]
    %v1358 = vld [vmem:[#allocation10 + $0x7c] sm:$0xf]
    %v1359 = vld [vmem:[%s6] sm:$0x1]
    %v1361 = vperm.slane %v1359, 0
    %v1395 = vunpack.c.l.b16 %v1327
    %v1396 = vunpack.c.l.b16 %v1328
    %v1397 = vunpack.c.l.b16 %v1329
    %v1398 = vunpack.c.l.b16 %v1330
    %v1399 = vunpack.c.l.b16 %v1331
    %v1400 = vunpack.c.l.b16 %v1332
    %v1401 = vunpack.c.l.b16 %v1333
    %v1402 = vunpack.c.l.b16 %v1334
    %v1403 = vunpack.c.l.b16 %v1335
    %v1404 = vunpack.c.l.b16 %v1336
    %v1405 = vunpack.c.l.b16 %v1337
    %v1406 = vunpack.c.l.b16 %v1338
    %v1407 = vunpack.c.l.b16 %v1339
    %v1408 = vunpack.c.l.b16 %v1340
    %v1409 = vunpack.c.l.b16 %v1341
    %v1410 = vunpack.c.l.b16 %v1342
    %v1411 = vunpack.c.l.b16 %v1343
    %v1412 = vunpack.c.l.b16 %v1344
    %v1413 = vunpack.c.l.b16 %v1345
    %v1414 = vunpack.c.l.b16 %v1346
    %v1415 = vunpack.c.l.b16 %v1347
    %v1416 = vunpack.c.l.b16 %v1348
    %v1417 = vunpack.c.l.b16 %v1349
    %v1418 = vunpack.c.l.b16 %v1350
    %v1419 = vunpack.c.l.b16 %v1351
    %v1420 = vunpack.c.l.b16 %v1352
    %v1421 = vunpack.c.l.b16 %v1353
    %v1422 = vunpack.c.l.b16 %v1354
    %v1423 = vunpack.c.l.b16 %v1355
    %v1424 = vunpack.c.l.b16 %v1356
    %v1425 = vunpack.c.l.b16 %v1357
    %v1426 = vunpack.c.l.b16 %v1358
    %v1427 = vpack.c.b16 %v1396, %v1395
    %v1428 = vpack.c.b16 %v1398, %v1397
    %v1429 = vpack.c.b16 %v1400, %v1399
    %v1430 = vpack.c.b16 %v1402, %v1401
    %v1431 = vpack.c.b16 %v1404, %v1403
    %v1432 = vpack.c.b16 %v1406, %v1405
    %v1433 = vpack.c.b16 %v1408, %v1407
    %v1434 = vpack.c.b16 %v1410, %v1409
    %v1435 = vpack.c.b16 %v1412, %v1411
    %v1436 = vpack.c.b16 %v1414, %v1413
    %v1437 = vpack.c.b16 %v1416, %v1415
    %v1438 = vpack.c.b16 %v1418, %v1417
    %v1439 = vpack.c.b16 %v1420, %v1419
    %v1440 = vpack.c.b16 %v1422, %v1421
    %v1441 = vpack.c.b16 %v1424, %v1423
    %v1442 = vpack.c.b16 %v1426, %v1425
    %1459 = vmatpush.bf16.msra.mxu0 %v1434
    %1460 = vmatpush.bf16.msra.mxu0 %v1433
    %1461 = vmatpush.bf16.msra.mxu0 %v1432
    %1462 = vmatpush.bf16.msra.mxu0 %v1431
    %1463 = vmatpush.bf16.msra.mxu0 %v1430
    %1464 = vmatpush.bf16.msra.mxu0 %v1429
    %1465 = vmatpush.bf16.msra.mxu0 %v1428
    %1466 = vmatpush.bf16.msra.mxu0 %v1427
    %1467 = vmatmul.bf16.gmra.mxu0 %v1325
    %v1468 = vpop.f32.mrf.mxu0
    %v1469 = vadd.f32 %v1361, %v1468
    %v1470 = vpop.f32.mrf.mxu0
    %1471 = vdwg.mxu0
    %1472 = vmatpush.bf16.msra.mxu0 %v1442
    %1473 = vmatpush.bf16.msra.mxu0 %v1441
    %1474 = vmatpush.bf16.msra.mxu0 %v1440
    %1475 = vmatpush.bf16.msra.mxu0 %v1439
    %1476 = vmatpush.bf16.msra.mxu0 %v1438
    %1477 = vmatpush.bf16.msra.mxu0 %v1437
    %1478 = vmatpush.bf16.msra.mxu0 %v1436
    %1479 = vmatpush.bf16.msra.mxu0 %v1435
    %1480 = vmatmul.bf16.gmra.mxu0 %v1326
    %v1481 = vpop.f32.mrf.mxu0
    %v1482 = vadd.f32 %v1469, %v1481
    %v1483 = vpop.f32.mrf.mxu0
    %1484 = vdwg.mxu0
    %1485 = vst [vmem:[#allocation11] sm:$0xff] %v1482
    // Predicated region
    $region50: #{tpu_custom_call.1} parent=1 // pred_check
      _
    $region51: #{tpu_custom_call.1} parent=1 // pred_check_branch
      %1487 = sbr.rel (0) target = $region53
    $region52: #{tpu_custom_call.1} parent=1 // pred_region
      %1489 = vsyncadd [#allocation4], 0
      %s1491 = sshll.u32 [#allocation11], 4
      %s1492 = int_to_ptr.vmem [resolvable:$true] %s1491
      %s1493 = sshll.u32 %s7, 4
      %s1494 = int_to_ptr.hbm [resolvable:$true] %s1493
      %1496 = dma.vmem_to_hbm [thread:$0]  %s1492, 128, %s1494, [#allocation4]
    $region53: #{tpu_custom_call.1} parent=1 // pred_fallthru
      _
    // Predicated region
    $region54: #{tpu_custom_call.1} parent=1 // pred_check
      _
    $region55: #{tpu_custom_call.1} parent=1 // pred_check_branch
      %1498 = sbr.rel (0) target = $region57
    $region56: #{tpu_custom_call.1} parent=1 // pred_region
      %1500 = dma.done [#allocation4], 128
    $region57: #{tpu_custom_call.1} parent=1 // pred_fallthru
      _
    %1501 = vsyncpa [#allocation3], 1
    %1502 = vsyncpa [#allocation6], 1
    %1503 = vsyncpa [#allocation9], 1
    %1504 = vsyncpa [#allocation4], 1

</llo_original>
